<compile_context>
chip_gen: v5e
topology: v5e:2x2
jax: 0.10.0
libtpu: 0.0.40
codegen_flags: <defaults>
</compile_context>

<pallas_src>
import jax
import jax.numpy as jnp
from jax import lax
from jax.experimental import pallas as pl
from jax.experimental.pallas import tpu as pltpu


def t5_layer_cross_attention(hidden_states, kv, ln_weight,
                             q_w, k_w, v_w, o_w, position_bias,
                             *, n_heads, eps=1e-6, tq=256):
    """hidden_states: [B, Sq, d_model]; kv: [B, Sk, d_model];
    q_w/k_w/v_w: [inner_dim, d_model]; o_w: [d_model, inner_dim] (PyTorch layout);
    ln_weight: [d_model]; position_bias: [1 or B, n_heads, Sq, Sk].
    Returns layer_output: [B, Sq, d_model]."""
    B, Sq, d_model = hidden_states.shape
    Bk, Sk, d_model_k = kv.shape
    assert Bk == B and d_model_k == d_model
    inner_dim = q_w.shape[0]
    assert inner_dim % n_heads == 0
    d_kv = inner_dim // n_heads
    assert q_w.shape == (inner_dim, d_model)
    assert k_w.shape == (inner_dim, d_model)
    assert v_w.shape == (inner_dim, d_model)
    assert o_w.shape == (d_model, inner_dim)
    assert position_bias.shape[1:] == (n_heads, Sq, Sk)

    # --- pick a query tile: as large as possible (<= requested), multiple of 8 ---
    tq = min(tq, Sq)
    if Sq % tq != 0:
        cands = [t for t in range(8, Sq, 8) if Sq % t == 0 and t <= tq]
        tq = max(cands) if cands else Sq
    nq = Sq // tq
    grid = (B, nq)

    f32 = jnp.float32
    dn = (((1,), (1,)), ((), ()))  # contract last dim of lhs with dim 1 of [out,in] weight
    in_dtype = hidden_states.dtype
    itemsize = jnp.dtype(in_dtype).itemsize

    bias_has_batch = position_bias.shape[0] == B
    if bias_has_batch:
        bias_map = lambda b, qi: (b, 0, qi, 0)
    else:
        bias_map = lambda b, qi: (0, 0, qi, 0)

    def kernel(x_ref, kv_ref, ln_ref, qw_ref, kw_ref, vw_ref, ow_ref, bias_ref,
               o_ref, k_sc, v_sc, ctx_sc):
        qi = pl.program_id(1)

        # ---- encoder K / V projections: once per batch element, resident scratch ----
        @pl.when(qi == 0)
        def _():
            enc = kv_ref[0]                                        # [Sk, d_model]
            k_sc[...] = lax.dot_general(enc, kw_ref[...], dn,
                                        preferred_element_type=f32).astype(k_sc.dtype)
            v_sc[...] = lax.dot_general(enc, vw_ref[...], dn,
                                        preferred_element_type=f32).astype(v_sc.dtype)

        x = x_ref[0]                                               # [tq, d_model]

        # ---- T5 layer norm (RMS, no mean subtraction), f32 math ----
        xf = x.astype(f32)
        var = jnp.mean(xf * xf, axis=-1, keepdims=True)
        norm_x = (xf * lax.rsqrt(var + eps)) * ln_ref[...].astype(f32)
        norm_x = norm_x.astype(x.dtype)

        # ---- Q projection (one big MXU matmul; weights in [out, in] layout) ----
        q_all = lax.dot_general(norm_x, qw_ref[...], dn,
                                preferred_element_type=f32).astype(x.dtype)
        k_all = k_sc[...]                                          # [Sk, inner_dim]
        v_all = v_sc[...]

        # ---- per-head attention (T5: no 1/sqrt(d_kv) scaling) ----
        for h in range(n_heads):
            sl = slice(h * d_kv, (h + 1) * d_kv)
            q_h = q_all[:, sl]                                     # [tq, d_kv]
            k_h = k_all[:, sl]                                     # [Sk, d_kv]
            v_h = v_all[:, sl]                                     # [Sk, d_kv]
            scores = lax.dot_general(q_h, k_h, dn,
                                     preferred_element_type=f32)   # [tq, Sk]
            scores = scores + bias_ref[0, h, :, :].astype(f32)
            m = jnp.max(scores, axis=-1, keepdims=True)
            e = jnp.exp(scores - m)
            w = e / jnp.sum(e, axis=-1, keepdims=True)             # softmax in f32
            # dropout == identity (eval), head_mask == None
            ctx_h = jnp.dot(w.astype(v_h.dtype), v_h,
                            preferred_element_type=f32)            # [tq, d_kv]
            ctx_sc[:, sl] = ctx_h.astype(ctx_sc.dtype)

        # ---- output projection + residual, written once per query tile ----
        y = lax.dot_general(ctx_sc[...], ow_ref[...], dn,
                            preferred_element_type=f32)            # [tq, d_model]
        o_ref[0] = (x.astype(f32) + y).astype(o_ref.dtype)

    # ---- VMEM budget (double-buffered pipeline bufs + resident scratch) ----
    vmem_est = 2 * itemsize * (
        tq * d_model                      # hidden tile
        + Sk * d_model                    # encoder tile
        + d_model                         # layer-norm weight
        + 3 * inner_dim * d_model         # q / k / v weights
        + d_model * inner_dim             # o weight
        + n_heads * tq * Sk               # position bias tile
        + tq * d_model                    # output tile
    ) + itemsize * (2 * Sk * inner_dim + tq * inner_dim)           # scratch
    vmem_limit = int(min(max(2 * vmem_est, 16 * 2**20), 64 * 2**20))

    flops = (2 * B * Sq * d_model * inner_dim            # q projection
             + 2 * 2 * B * Sk * d_model * inner_dim      # k, v projections
             + 2 * 2 * B * n_heads * Sq * Sk * d_kv      # qk^T and p@v
             + 2 * B * Sq * inner_dim * d_model)         # o projection
    bytes_accessed = itemsize * (2 * hidden_states.size + kv.size
                                 + q_w.size + k_w.size + v_w.size + o_w.size
                                 + ln_weight.size + position_bias.size)
    cost = pl.CostEstimate(flops=flops,
                           transcendentals=B * n_heads * Sq * Sk,
                           bytes_accessed=bytes_accessed)

    out = pl.pallas_call(
        kernel,
        out_shape=jax.ShapeDtypeStruct((B, Sq, d_model), in_dtype),
        grid_spec=pltpu.PrefetchScalarGridSpec(
            num_scalar_prefetch=0,
            grid=grid,
            in_specs=[
                pl.BlockSpec((1, tq, d_model), lambda b, qi: (b, qi, 0)),   # hidden tile
                pl.BlockSpec((1, Sk, d_model), lambda b, qi: (b, 0, 0)),    # encoder states
                pl.BlockSpec((1, d_model), lambda b, qi: (0, 0)),           # layer-norm w
                pl.BlockSpec((inner_dim, d_model), lambda b, qi: (0, 0)),   # Wq (resident)
                pl.BlockSpec((inner_dim, d_model), lambda b, qi: (0, 0)),   # Wk (resident)
                pl.BlockSpec((inner_dim, d_model), lambda b, qi: (0, 0)),   # Wv (resident)
                pl.BlockSpec((d_model, inner_dim), lambda b, qi: (0, 0)),   # Wo (resident)
                pl.BlockSpec((1, n_heads, tq, Sk), bias_map),               # position bias
            ],
            out_specs=pl.BlockSpec((1, tq, d_model), lambda b, qi: (b, qi, 0)),
            scratch_shapes=[
                pltpu.VMEM((Sk, inner_dim), in_dtype),    # projected K (per batch element)
                pltpu.VMEM((Sk, inner_dim), in_dtype),    # projected V
                pltpu.VMEM((tq, inner_dim), in_dtype),    # per-tile attention context
            ],
        ),
        compiler_params=pltpu.CompilerParams(
            dimension_semantics=("parallel", "arbitrary"),
            vmem_limit_bytes=vmem_limit),
        cost_estimate=cost,
    )(hidden_states, kv, ln_weight.reshape(1, d_model),
      q_w, k_w, v_w, o_w, position_bias)

    return out


def _reference(x, enc, ln_w, q_w, k_w, v_w, o_w, bias, eps, n_heads):
    """Plain-JAX reference mirroring the PyTorch T5LayerCrossAttention forward."""
    d_kv = q_w.shape[0] // n_heads
    xf = x.astype(jnp.float32)
    var = jnp.mean(xf * xf, axis=-1, keepdims=True)
    nx = (xf / jnp.sqrt(var + eps)) * ln_w
    nx = nx.astype(x.dtype)
    q = jnp.einsum('bqd,id->bqi', nx, q_w)
    k = jnp.einsum('bkd,id->bki', enc, k_w)
    v = jnp.einsum('bkd,id->bki', enc, v_w)
    B, Sq, _ = x.shape
    Sk = enc.shape[1]
    qh = q.reshape(B, Sq, n_heads, d_kv).transpose(0, 2, 1, 3)
    kh = k.reshape(B, Sk, n_heads, d_kv).transpose(0, 2, 1, 3)
    vh = v.reshape(B, Sk, n_heads, d_kv).transpose(0, 2, 1, 3)
    scores = jnp.einsum('bhqd,bhkd->bhqk', qh, kh) + bias
    w = jax.nn.softmax(scores.astype(jnp.float32), axis=-1).astype(scores.dtype)
    ctx = jnp.einsum('bhqk,bhkd->bhqd', w, vh)
    ctx = ctx.transpose(0, 2, 1, 3).reshape(B, Sq, n_heads * d_kv)
    y = jnp.einsum('bqi,di->bqd', ctx, o_w)
    return x + y


if __name__ == "__main__":
    # Small T5-like cross-attention config.
    B, Sq, Sk = 2, 8, 16
    d_model, n_heads, d_kv = 128, 4, 32
    inner_dim = n_heads * d_kv
    eps = 1e-6

    key = jax.random.PRNGKey(0)
    keys = jax.random.split(key, 7)
    x = jax.random.normal(keys[0], (B, Sq, d_model), dtype=jnp.float32)
    enc = jax.random.normal(keys[1], (B, Sk, d_model), dtype=jnp.float32)
    # PyTorch nn.Linear weight layout: [out_features, in_features], bias=False.
    q_w = jax.random.normal(keys[2], (inner_dim, d_model), dtype=jnp.float32) * 0.05
    k_w = jax.random.normal(keys[3], (inner_dim, d_model), dtype=jnp.float32) * 0.05
    v_w = jax.random.normal(keys[4], (inner_dim, d_model), dtype=jnp.float32) * 0.05
    o_w = jax.random.normal(keys[5], (d_model, inner_dim), dtype=jnp.float32) * 0.05
    ln_w = 1.0 + 0.1 * jax.random.normal(keys[6], (d_model,), dtype=jnp.float32)

    # Cross-attention position_bias: zero relative bias plus an additive attention
    # mask that disallows the final 3 encoder positions (as HF would pass it in).
    mask = jnp.where(jnp.arange(Sk) < Sk - 3, 0.0, -1e9).astype(jnp.float32)
    position_bias = jnp.zeros((1, n_heads, Sq, Sk), jnp.float32) + mask[None, None, None, :]

    out = t5_layer_cross_attention(x, enc, ln_w, q_w, k_w, v_w, o_w, position_bias,
                                   n_heads=n_heads, eps=eps)
    out = jax.block_until_ready(out)

    ref = _reference(x, enc, ln_w, q_w, k_w, v_w, o_w, position_bias, eps, n_heads)
    assert out.shape == (B, Sq, d_model)
    assert jnp.allclose(out, ref, atol=2e-4, rtol=2e-4), float(jnp.max(jnp.abs(out - ref)))

    print("KERNEL_OK")
</pallas_src>

<mosaic_0001>
module attributes {stable_mosaic.version = 11 : i64} {
  func.func @kernel(%arg0: i32, %arg1: i32, %arg2: memref<1x8x128xf32, #tpu.memory_space<vmem>>, %arg3: memref<1x16x128xf32, #tpu.memory_space<vmem>>, %arg4: memref<1x128xf32, #tpu.memory_space<vmem>>, %arg5: memref<128x128xf32, #tpu.memory_space<vmem>>, %arg6: memref<128x128xf32, #tpu.memory_space<vmem>>, %arg7: memref<128x128xf32, #tpu.memory_space<vmem>>, %arg8: memref<128x128xf32, #tpu.memory_space<vmem>>, %arg9: memref<1x4x8x16xf32, #tpu.memory_space<vmem>>, %arg10: memref<1x8x128xf32, #tpu.memory_space<vmem>>, %arg11: memref<16x128xf32, #tpu.memory_space<vmem>>, %arg12: memref<16x128xf32, #tpu.memory_space<vmem>>, %arg13: memref<8x128xf32, #tpu.memory_space<vmem>>) attributes {dimension_semantics = [#tpu.dimension_semantics<parallel>, #tpu.dimension_semantics<arbitrary>], iteration_bounds = array<i64: 2, 1>, scalar_prefetch = 0 : i64, scratch_operands = 3 : i64, tpu.core_type = #tpu.core_type<tc>, window_params = [{transform_indices = @transform_0, window_bounds = array<i64: 1, 8, 128>}, {transform_indices = @transform_1, window_bounds = array<i64: 1, 16, 128>}, {pipeline_mode = #tpu.pipeline_mode<synchronous>, transform_indices = @transform_2, window_bounds = array<i64: 1, 128>}, {pipeline_mode = #tpu.pipeline_mode<synchronous>, transform_indices = @transform_3, window_bounds = array<i64: 128, 128>}, {pipeline_mode = #tpu.pipeline_mode<synchronous>, transform_indices = @transform_4, window_bounds = array<i64: 128, 128>}, {pipeline_mode = #tpu.pipeline_mode<synchronous>, transform_indices = @transform_5, window_bounds = array<i64: 128, 128>}, {pipeline_mode = #tpu.pipeline_mode<synchronous>, transform_indices = @transform_6, window_bounds = array<i64: 128, 128>}, {transform_indices = @transform_7, window_bounds = array<i64: 1, 4, 8, 16>}, {transform_indices = @transform_8, window_bounds = array<i64: 1, 8, 128>}]} {
    %c0_i32 = arith.constant 0 : i32
    %0 = arith.cmpi eq, %arg1, %c0_i32 : i32
    %1 = arith.extui %0 : i1 to i32
    %c0_i32_0 = arith.constant 0 : i32
    %2 = arith.cmpi ne, %1, %c0_i32_0 : i32
    scf.if %2 {
      %c0_56 = arith.constant 0 : index
      %c0_57 = arith.constant 0 : index
      %c0_58 = arith.constant 0 : index
      %101 = vector.load %arg3[%c0_56, %c0_57, %c0_58] : memref<1x16x128xf32, #tpu.memory_space<vmem>>, vector<1x16x128xf32>
      %102 = vector.shape_cast %101 : vector<1x16x128xf32> to vector<16x128xf32>
      %c0_59 = arith.constant 0 : index
      %c0_60 = arith.constant 0 : index
      %103 = vector.load %arg6[%c0_59, %c0_60] : memref<128x128xf32, #tpu.memory_space<vmem>>, vector<128x128xf32>
      %cst_61 = arith.constant dense<0.000000e+00> : vector<16x128xf32>
      %104 = tpu.matmul %102, %103, %cst_61 {dimension_numbers = #tpu.dot_dimension_numbers<[1], [1], [0], [0], [0, 0, 1, 0], [], []>} : vector<16x128xf32>, vector<128x128xf32>, vector<16x128xf32> -> vector<16x128xf32>
      %c0_62 = arith.constant 0 : index
      %c0_63 = arith.constant 0 : index
      %105 = vector.load %arg11[%c0_62, %c0_63] : memref<16x128xf32, #tpu.memory_space<vmem>>, vector<16x128xf32>
      tpu.vector_store %arg11[%c0_62, %c0_63], %104 {strides = array<i32>} : memref<16x128xf32, #tpu.memory_space<vmem>>, vector<16x128xf32>,
      %c0_64 = arith.constant 0 : index
      %c0_65 = arith.constant 0 : index
      %106 = vector.load %arg7[%c0_64, %c0_65] : memref<128x128xf32, #tpu.memory_space<vmem>>, vector<128x128xf32>
      %cst_66 = arith.constant dense<0.000000e+00> : vector<16x128xf32>
      %107 = tpu.matmul %102, %106, %cst_66 {dimension_numbers = #tpu.dot_dimension_numbers<[1], [1], [0], [0], [0, 0, 1, 0], [], []>} : vector<16x128xf32>, vector<128x128xf32>, vector<16x128xf32> -> vector<16x128xf32>
      %c0_67 = arith.constant 0 : index
      %c0_68 = arith.constant 0 : index
      %108 = vector.load %arg12[%c0_67, %c0_68] : memref<16x128xf32, #tpu.memory_space<vmem>>, vector<16x128xf32>
      tpu.vector_store %arg12[%c0_67, %c0_68], %107 {strides = array<i32>} : memref<16x128xf32, #tpu.memory_space<vmem>>, vector<16x128xf32>,
    } else {
    }
    %c0 = arith.constant 0 : index
    %c0_1 = arith.constant 0 : index
    %c0_2 = arith.constant 0 : index
    %3 = vector.load %arg2[%c0, %c0_1, %c0_2] : memref<1x8x128xf32, #tpu.memory_space<vmem>>, vector<1x8x128xf32>
    %4 = vector.shape_cast %3 : vector<1x8x128xf32> to vector<8x128xf32>
    %5 = arith.mulf %4, %4 : vector<8x128xf32>
    %cst = arith.constant dense<0.000000e+00> : vector<8xf32>
    %6 = vector.multi_reduction <add>, %5, %cst [1] : vector<8x128xf32> to vector<8xf32>
    %7 = vector.shape_cast %6 : vector<8xf32> to vector<8x1xf32>
    %cst_3 = arith.constant 1.280000e+02 : f32
    %8 = vector.broadcast %cst_3 : f32 to vector<8x1xf32>
    %9 = arith.divf %7, %8 : vector<8x1xf32>
    %cst_4 = arith.constant 9.99999997E-7 : f32
    %10 = vector.broadcast %cst_4 : f32 to vector<8x1xf32>
    %11 = arith.addf %9, %10 : vector<8x1xf32>
    %12 = math.rsqrt %11 : vector<8x1xf32>
    %13 = vector.broadcast %12 : vector<8x1xf32> to vector<8x128xf32>
    %14 = arith.mulf %4, %13 : vector<8x128xf32>
    %c0_5 = arith.constant 0 : index
    %c0_6 = arith.constant 0 : index
    %15 = vector.load %arg4[%c0_5, %c0_6] : memref<1x128xf32, #tpu.memory_space<vmem>>, vector<1x128xf32>
    %16 = vector.broadcast %15 : vector<1x128xf32> to vector<8x128xf32>
    %17 = arith.mulf %14, %16 : vector<8x128xf32>
    %c0_7 = arith.constant 0 : index
    %c0_8 = arith.constant 0 : index
    %18 = vector.load %arg5[%c0_7, %c0_8] : memref<128x128xf32, #tpu.memory_space<vmem>>, vector<128x128xf32>
    %cst_9 = arith.constant dense<0.000000e+00> : vector<8x128xf32>
    %19 = tpu.matmul %17, %18, %cst_9 {dimension_numbers = #tpu.dot_dimension_numbers<[1], [1], [0], [0], [0, 0, 1, 0], [], []>} : vector<8x128xf32>, vector<128x128xf32>, vector<8x128xf32> -> vector<8x128xf32>
    %c0_10 = arith.constant 0 : index
    %c0_11 = arith.constant 0 : index
    %20 = vector.load %arg11[%c0_10, %c0_11] : memref<16x128xf32, #tpu.memory_space<vmem>>, vector<16x128xf32>
    %c0_12 = arith.constant 0 : index
    %c0_13 = arith.constant 0 : index
    %21 = vector.load %arg12[%c0_12, %c0_13] : memref<16x128xf32, #tpu.memory_space<vmem>>, vector<16x128xf32>
    %22 = vector.extract_strided_slice %19 {offsets = [0, 0], sizes = [8, 32], strides = [1, 1]} : vector<8x128xf32> to vector<8x32xf32>
    %23 = vector.extract_strided_slice %20 {offsets = [0, 0], sizes = [16, 32], strides = [1, 1]} : vector<16x128xf32> to vector<16x32xf32>
    %24 = vector.extract_strided_slice %21 {offsets = [0, 0], sizes = [16, 32], strides = [1, 1]} : vector<16x128xf32> to vector<16x32xf32>
    %cst_14 = arith.constant dense<0.000000e+00> : vector<8x16xf32>
    %25 = tpu.matmul %22, %23, %cst_14 {dimension_numbers = #tpu.dot_dimension_numbers<[1], [1], [0], [0], [0, 0, 1, 0], [], []>} : vector<8x32xf32>, vector<16x32xf32>, vector<8x16xf32> -> vector<8x16xf32>
    %c0_15 = arith.constant 0 : index
    %c0_16 = arith.constant 0 : index
    %c0_17 = arith.constant 0 : index
    %c0_18 = arith.constant 0 : index
    %26 = vector.load %arg9[%c0_15, %c0_16, %c0_17, %c0_18] : memref<1x4x8x16xf32, #tpu.memory_space<vmem>>, vector<1x1x8x16xf32>
    %27 = vector.shape_cast %26 : vector<1x1x8x16xf32> to vector<8x16xf32>
    %28 = arith.addf %25, %27 : vector<8x16xf32>
    %cst_19 = arith.constant dense<0xFF800000> : vector<8xf32>
    %29 = vector.multi_reduction <maximumf>, %28, %cst_19 [1] : vector<8x16xf32> to vector<8xf32>
    %30 = vector.shape_cast %29 : vector<8xf32> to vector<8x1xf32>
    %31 = vector.broadcast %30 : vector<8x1xf32> to vector<8x16xf32>
    %32 = arith.subf %28, %31 : vector<8x16xf32>
    %33 = math.exp %32 : vector<8x16xf32>
    %cst_20 = arith.constant dense<0.000000e+00> : vector<8xf32>
    %34 = vector.multi_reduction <add>, %33, %cst_20 [1] : vector<8x16xf32> to vector<8xf32>
    %35 = vector.shape_cast %34 : vector<8xf32> to vector<8x1xf32>
    %36 = vector.broadcast %35 : vector<8x1xf32> to vector<8x16xf32>
    %37 = arith.divf %33, %36 : vector<8x16xf32>
    %cst_21 = arith.constant dense<0.000000e+00> : vector<8x32xf32>
    %38 = tpu.matmul %37, %24, %cst_21 {dimension_numbers = #tpu.dot_dimension_numbers<[1], [0], [0], [1], [0, 0, 1, 1], [], []>} : vector<8x16xf32>, vector<16x32xf32>, vector<8x32xf32> -> vector<8x32xf32>
    %c0_22 = arith.constant 0 : index
    %c0_23 = arith.constant 0 : index
    %39 = vector.load %arg13[%c0_22, %c0_23] : memref<8x128xf32, #tpu.memory_space<vmem>>, vector<8x32xf32>
    tpu.vector_store %arg13[%c0_22, %c0_23], %38 {strides = array<i32>} : memref<8x128xf32, #tpu.memory_space<vmem>>, vector<8x32xf32>,
    %40 = vector.extract_strided_slice %19 {offsets = [0, 32], sizes = [8, 32], strides = [1, 1]} : vector<8x128xf32> to vector<8x32xf32>
    %41 = vector.extract_strided_slice %20 {offsets = [0, 32], sizes = [16, 32], strides = [1, 1]} : vector<16x128xf32> to vector<16x32xf32>
    %42 = vector.extract_strided_slice %21 {offsets = [0, 32], sizes = [16, 32], strides = [1, 1]} : vector<16x128xf32> to vector<16x32xf32>
    %cst_24 = arith.constant dense<0.000000e+00> : vector<8x16xf32>
    %43 = tpu.matmul %40, %41, %cst_24 {dimension_numbers = #tpu.dot_dimension_numbers<[1], [1], [0], [0], [0, 0, 1, 0], [], []>} : vector<8x32xf32>, vector<16x32xf32>, vector<8x16xf32> -> vector<8x16xf32>
    %c0_25 = arith.constant 0 : index
    %c1 = arith.constant 1 : index
    %c0_26 = arith.constant 0 : index
    %c0_27 = arith.constant 0 : index
    %44 = vector.load %arg9[%c0_25, %c1, %c0_26, %c0_27] : memref<1x4x8x16xf32, #tpu.memory_space<vmem>>, vector<1x1x8x16xf32>
    %45 = vector.shape_cast %44 : vector<1x1x8x16xf32> to vector<8x16xf32>
    %46 = arith.addf %43, %45 : vector<8x16xf32>
    %cst_28 = arith.constant dense<0xFF800000> : vector<8xf32>
    %47 = vector.multi_reduction <maximumf>, %46, %cst_28 [1] : vector<8x16xf32> to vector<8xf32>
    %48 = vector.shape_cast %47 : vector<8xf32> to vector<8x1xf32>
    %49 = vector.broadcast %48 : vector<8x1xf32> to vector<8x16xf32>
    %50 = arith.subf %46, %49 : vector<8x16xf32>
    %51 = math.exp %50 : vector<8x16xf32>
    %cst_29 = arith.constant dense<0.000000e+00> : vector<8xf32>
    %52 = vector.multi_reduction <add>, %51, %cst_29 [1] : vector<8x16xf32> to vector<8xf32>
    %53 = vector.shape_cast %52 : vector<8xf32> to vector<8x1xf32>
    %54 = vector.broadcast %53 : vector<8x1xf32> to vector<8x16xf32>
    %55 = arith.divf %51, %54 : vector<8x16xf32>
    %cst_30 = arith.constant dense<0.000000e+00> : vector<8x32xf32>
    %56 = tpu.matmul %55, %42, %cst_30 {dimension_numbers = #tpu.dot_dimension_numbers<[1], [0], [0], [1], [0, 0, 1, 1], [], []>} : vector<8x16xf32>, vector<16x32xf32>, vector<8x32xf32> -> vector<8x32xf32>
    %c0_31 = arith.constant 0 : index
    %c32 = arith.constant 32 : index
    %57 = vector.load %arg13[%c0_31, %c32] : memref<8x128xf32, #tpu.memory_space<vmem>>, vector<8x32xf32>
    tpu.vector_store %arg13[%c0_31, %c32], %56 {strides = array<i32>} : memref<8x128xf32, #tpu.memory_space<vmem>>, vector<8x32xf32>,
    %58 = vector.extract_strided_slice %19 {offsets = [0, 64], sizes = [8, 32], strides = [1, 1]} : vector<8x128xf32> to vector<8x32xf32>
    %59 = vector.extract_strided_slice %20 {offsets = [0, 64], sizes = [16, 32], strides = [1, 1]} : vector<16x128xf32> to vector<16x32xf32>
    %60 = vector.extract_strided_slice %21 {offsets = [0, 64], sizes = [16, 32], strides = [1, 1]} : vector<16x128xf32> to vector<16x32xf32>
    %cst_32 = arith.constant dense<0.000000e+00> : vector<8x16xf32>
    %61 = tpu.matmul %58, %59, %cst_32 {dimension_numbers = #tpu.dot_dimension_numbers<[1], [1], [0], [0], [0, 0, 1, 0], [], []>} : vector<8x32xf32>, vector<16x32xf32>, vector<8x16xf32> -> vector<8x16xf32>
    %c0_33 = arith.constant 0 : index
    %c2 = arith.constant 2 : index
    %c0_34 = arith.constant 0 : index
    %c0_35 = arith.constant 0 : index
    %62 = vector.load %arg9[%c0_33, %c2, %c0_34, %c0_35] : memref<1x4x8x16xf32, #tpu.memory_space<vmem>>, vector<1x1x8x16xf32>
    %63 = vector.shape_cast %62 : vector<1x1x8x16xf32> to vector<8x16xf32>
    %64 = arith.addf %61, %63 : vector<8x16xf32>
    %cst_36 = arith.constant dense<0xFF800000> : vector<8xf32>
    %65 = vector.multi_reduction <maximumf>, %64, %cst_36 [1] : vector<8x16xf32> to vector<8xf32>
    %66 = vector.shape_cast %65 : vector<8xf32> to vector<8x1xf32>
    %67 = vector.broadcast %66 : vector<8x1xf32> to vector<8x16xf32>
    %68 = arith.subf %64, %67 : vector<8x16xf32>
    %69 = math.exp %68 : vector<8x16xf32>
    %cst_37 = arith.constant dense<0.000000e+00> : vector<8xf32>
    %70 = vector.multi_reduction <add>, %69, %cst_37 [1] : vector<8x16xf32> to vector<8xf32>
    %71 = vector.shape_cast %70 : vector<8xf32> to vector<8x1xf32>
    %72 = vector.broadcast %71 : vector<8x1xf32> to vector<8x16xf32>
    %73 = arith.divf %69, %72 : vector<8x16xf32>
    %cst_38 = arith.constant dense<0.000000e+00> : vector<8x32xf32>
    %74 = tpu.matmul %73, %60, %cst_38 {dimension_numbers = #tpu.dot_dimension_numbers<[1], [0], [0], [1], [0, 0, 1, 1], [], []>} : vector<8x16xf32>, vector<16x32xf32>, vector<8x32xf32> -> vector<8x32xf32>
    %c0_39 = arith.constant 0 : index
    %c64 = arith.constant 64 : index
    %75 = vector.load %arg13[%c0_39, %c64] : memref<8x128xf32, #tpu.memory_space<vmem>>, vector<8x32xf32>
    tpu.vector_store %arg13[%c0_39, %c64], %74 {strides = array<i32>} : memref<8x128xf32, #tpu.memory_space<vmem>>, vector<8x32xf32>,
    %76 = vector.extract_strided_slice %19 {offsets = [0, 96], sizes = [8, 32], strides = [1, 1]} : vector<8x128xf32> to vector<8x32xf32>
    %77 = vector.extract_strided_slice %20 {offsets = [0, 96], sizes = [16, 32], strides = [1, 1]} : vector<16x128xf32> to vector<16x32xf32>
    %78 = vector.extract_strided_slice %21 {offsets = [0, 96], sizes = [16, 32], strides = [1, 1]} : vector<16x128xf32> to vector<16x32xf32>
    %cst_40 = arith.constant dense<0.000000e+00> : vector<8x16xf32>
    %79 = tpu.matmul %76, %77, %cst_40 {dimension_numbers = #tpu.dot_dimension_numbers<[1], [1], [0], [0], [0, 0, 1, 0], [], []>} : vector<8x32xf32>, vector<16x32xf32>, vector<8x16xf32> -> vector<8x16xf32>
    %c0_41 = arith.constant 0 : index
    %c3 = arith.constant 3 : index
    %c0_42 = arith.constant 0 : index
    %c0_43 = arith.constant 0 : index
    %80 = vector.load %arg9[%c0_41, %c3, %c0_42, %c0_43] : memref<1x4x8x16xf32, #tpu.memory_space<vmem>>, vector<1x1x8x16xf32>
    %81 = vector.shape_cast %80 : vector<1x1x8x16xf32> to vector<8x16xf32>
    %82 = arith.addf %79, %81 : vector<8x16xf32>
    %cst_44 = arith.constant dense<0xFF800000> : vector<8xf32>
    %83 = vector.multi_reduction <maximumf>, %82, %cst_44 [1] : vector<8x16xf32> to vector<8xf32>
    %84 = vector.shape_cast %83 : vector<8xf32> to vector<8x1xf32>
    %85 = vector.broadcast %84 : vector<8x1xf32> to vector<8x16xf32>
    %86 = arith.subf %82, %85 : vector<8x16xf32>
    %87 = math.exp %86 : vector<8x16xf32>
    %cst_45 = arith.constant dense<0.000000e+00> : vector<8xf32>
    %88 = vector.multi_reduction <add>, %87, %cst_45 [1] : vector<8x16xf32> to vector<8xf32>
    %89 = vector.shape_cast %88 : vector<8xf32> to vector<8x1xf32>
    %90 = vector.broadcast %89 : vector<8x1xf32> to vector<8x16xf32>
    %91 = arith.divf %87, %90 : vector<8x16xf32>
    %cst_46 = arith.constant dense<0.000000e+00> : vector<8x32xf32>
    %92 = tpu.matmul %91, %78, %cst_46 {dimension_numbers = #tpu.dot_dimension_numbers<[1], [0], [0], [1], [0, 0, 1, 1], [], []>} : vector<8x16xf32>, vector<16x32xf32>, vector<8x32xf32> -> vector<8x32xf32>
    %c0_47 = arith.constant 0 : index
    %c96 = arith.constant 96 : index
    %93 = vector.load %arg13[%c0_47, %c96] : memref<8x128xf32, #tpu.memory_space<vmem>>, vector<8x32xf32>
    tpu.vector_store %arg13[%c0_47, %c96], %92 {strides = array<i32>} : memref<8x128xf32, #tpu.memory_space<vmem>>, vector<8x32xf32>,
    %c0_48 = arith.constant 0 : index
    %c0_49 = arith.constant 0 : index
    %94 = vector.load %arg13[%c0_48, %c0_49] : memref<8x128xf32, #tpu.memory_space<vmem>>, vector<8x128xf32>
    %c0_50 = arith.constant 0 : index
    %c0_51 = arith.constant 0 : index
    %95 = vector.load %arg8[%c0_50, %c0_51] : memref<128x128xf32, #tpu.memory_space<vmem>>, vector<128x128xf32>
    %cst_52 = arith.constant dense<0.000000e+00> : vector<8x128xf32>
    %96 = tpu.matmul %94, %95, %cst_52 {dimension_numbers = #tpu.dot_dimension_numbers<[1], [1], [0], [0], [0, 0, 1, 0], [], []>} : vector<8x128xf32>, vector<128x128xf32>, vector<8x128xf32> -> vector<8x128xf32>
    %97 = arith.addf %4, %96 : vector<8x128xf32>
    %c0_53 = arith.constant 0 : index
    %c0_54 = arith.constant 0 : index
    %c0_55 = arith.constant 0 : index
    %98 = vector.load %arg10[%c0_53, %c0_54, %c0_55] : memref<1x8x128xf32, #tpu.memory_space<vmem>>, vector<1x8x128xf32>
    %99 = vector.shape_cast %98 : vector<1x8x128xf32> to vector<8x128xf32>
    %100 = vector.shape_cast %97 : vector<8x128xf32> to vector<1x8x128xf32>
    tpu.vector_store %arg10[%c0_53, %c0_54, %c0_55], %100 {strides = array<i32>} : memref<1x8x128xf32, #tpu.memory_space<vmem>>, vector<1x8x128xf32>,
    return
  }
  func.func @transform_0(%arg0: i32, %arg1: i32) -> (i32, i32, i32) {
    %c0_i32 = arith.constant 0 : i32
    %c0_i32_0 = arith.constant 0 : i32
    return %arg0, %arg1, %c0_i32 : i32, i32, i32
  }
  func.func @transform_1(%arg0: i32, %arg1: i32) -> (i32, i32, i32) {
    %c0_i32 = arith.constant 0 : i32
    %c0_i32_0 = arith.constant 0 : i32
    %c0_i32_1 = arith.constant 0 : i32
    return %arg0, %c0_i32, %c0_i32_0 : i32, i32, i32
  }
  func.func @transform_2(%arg0: i32, %arg1: i32) -> (i32, i32) {
    %c0_i32 = arith.constant 0 : i32
    %c0_i32_0 = arith.constant 0 : i32
    %c0_i32_1 = arith.constant 0 : i32
    return %c0_i32, %c0_i32_0 : i32, i32
  }
  func.func @transform_3(%arg0: i32, %arg1: i32) -> (i32, i32) {
    %c0_i32 = arith.constant 0 : i32
    %c0_i32_0 = arith.constant 0 : i32
    %c0_i32_1 = arith.constant 0 : i32
    return %c0_i32, %c0_i32_0 : i32, i32
  }
  func.func @transform_4(%arg0: i32, %arg1: i32) -> (i32, i32) {
    %c0_i32 = arith.constant 0 : i32
    %c0_i32_0 = arith.constant 0 : i32
    %c0_i32_1 = arith.constant 0 : i32
    return %c0_i32, %c0_i32_0 : i32, i32
  }
  func.func @transform_5(%arg0: i32, %arg1: i32) -> (i32, i32) {
    %c0_i32 = arith.constant 0 : i32
    %c0_i32_0 = arith.constant 0 : i32
    %c0_i32_1 = arith.constant 0 : i32
    return %c0_i32, %c0_i32_0 : i32, i32
  }
  func.func @transform_6(%arg0: i32, %arg1: i32) -> (i32, i32) {
    %c0_i32 = arith.constant 0 : i32
    %c0_i32_0 = arith.constant 0 : i32
    %c0_i32_1 = arith.constant 0 : i32
    return %c0_i32, %c0_i32_0 : i32, i32
  }
  func.func @transform_7(%arg0: i32, %arg1: i32) -> (i32, i32, i32, i32) {
    %c0_i32 = arith.constant 0 : i32
    %c0_i32_0 = arith.constant 0 : i32
    %c0_i32_1 = arith.constant 0 : i32
    %c0_i32_2 = arith.constant 0 : i32
    return %c0_i32, %c0_i32_0, %arg1, %c0_i32_1 : i32, i32, i32, i32
  }
  func.func @transform_8(%arg0: i32, %arg1: i32) -> (i32, i32, i32) {
    %c0_i32 = arith.constant 0 : i32
    %c0_i32_0 = arith.constant 0 : i32
    return %arg0, %arg1, %c0_i32 : i32, i32, i32
  }
}

</mosaic_0001>

<llo_original>
// kernel: tpu_custom_call.1
$region0: #{tpu_custom_call.1}
  #allocation0 [shape = 'u32[]', space=smem, size = 0x4, offset = 0x4, fixed_abs, tag = 'smem constant byte address 0x4 - core index']
  #allocation1 [shape = 'u32[72,128]{1,0:T(1,128)}', space=vmem, size = 0x9000, scoped, tag = 'internal scratch']
  #allocation2 [shape = 'f32[16,128]{1,0:T(8,128)}', space=vmem, size = 0x2000, scoped, tag = 'scratch operand']
  #allocation3 [shape = 'f32[16,128]{1,0:T(8,128)}', space=vmem, size = 0x2000, scoped, tag = 'scratch operand']
  #allocation4 [shape = 'f32[8,128]{1,0:T(8,128)}', space=vmem, size = 0x1000, scoped, tag = 'scratch operand']
  %s0 = inlined_call_operand.hbm [shape: f32[2,8,128], index: 0, kind: input, shape index: {}]
  %s1 = inlined_call_operand.hbm [shape: f32[2,16,128], index: 1, kind: input, shape index: {}]
  %s2 = inlined_call_operand.vmem [shape: f32[1,128], index: 2, kind: input, shape index: {}]
  %s3 = inlined_call_operand.hbm [shape: f32[128,128], index: 3, kind: input, shape index: {}]
  %s4 = inlined_call_operand.hbm [shape: f32[128,128], index: 4, kind: input, shape index: {}]
  %s5 = inlined_call_operand.hbm [shape: f32[128,128], index: 5, kind: input, shape index: {}]
  %s6 = inlined_call_operand.hbm [shape: f32[128,128], index: 6, kind: input, shape index: {}]
  %s7 = inlined_call_operand.hbm [shape: f32[1,4,8,16], index: 7, kind: input, shape index: {}]
  %s8 = inlined_call_operand.hbm [shape: f32[2,8,128], index: 8, kind: output, shape index: {}]
  %s9 = sld [smem:[#allocation0]]
  $region97: #{tpu_custom_call.1} parent=0
    _
  %s11 = ssub.s32 1, %s9
  %s12 = scalar_select 0, %s11, %s9
  $region1: #{tpu_custom_call.1} parent=0
    #allocation5 [shape = 'u8[8192]{0}', space=vmem, size = 0x2000, scoped, tag = 'input window, operand 0']
    #allocation6 [shape = 's32[2]{0}', space=sflag, size = 0x8, scoped, tag = 'scoped memory for tpu_custom_call.1']
    #allocation7 [shape = 's32[2]{0}', space=sflag, size = 0x8, scoped, tag = 'scoped memory for tpu_custom_call.1']
    #allocation8 [shape = 'u8[16384]{0}', space=vmem, size = 0x4000, scoped, tag = 'input window, operand 1']
    #allocation9 [shape = 's32[2]{0}', space=sflag, size = 0x8, scoped, tag = 'scoped memory for tpu_custom_call.1']
    #allocation10 [shape = 'u8[65536]{0}', space=vmem, size = 0x10000, scoped, tag = 'input window, operand 3, single buffered']
    #allocation11 [shape = 'u8[65536]{0}', space=vmem, size = 0x10000, scoped, tag = 'input window, operand 4, single buffered']
    #allocation12 [shape = 's32[1]{0}', space=sflag, size = 0x4, scoped, tag = 'scoped memory for tpu_custom_call.1']
    #allocation13 [shape = 'u8[65536]{0}', space=vmem, size = 0x10000, scoped, tag = 'input window, operand 5, single buffered']
    #allocation14 [shape = 'u8[65536]{0}', space=vmem, size = 0x10000, scoped, tag = 'input window, operand 6, single buffered']
    #allocation15 [shape = 's32[1]{0}', space=sflag, size = 0x4, scoped, tag = 'scoped memory for tpu_custom_call.1']
    #allocation16 [shape = 'u8[16384]{0}', space=vmem, size = 0x4000, scoped, tag = 'input window, operand 7, single buffered']
    #allocation17 [shape = 'u8[8192]{0}', space=vmem, size = 0x2000, scoped, tag = 'output window, operand 0']
    %13 = vsyncpa [#allocation6], 0
    %s14 = scalar_lea.sflag [#allocation6], 1
    %15 = vsyncpa %s14, 0
    %16 = vsyncpa [#allocation9], 0
    %s17 = scalar_lea.sflag [#allocation9], 1
    %18 = vsyncpa %s17, 0
    %19 = vsyncpa [#allocation12], 0
    %20 = vsyncpa [#allocation15], 0
    %21 = vsyncpa [#allocation7], 0
    %s22 = scalar_lea.sflag [#allocation7], 1
    %23 = vsyncpa %s22, 0
    loop: start=0, step=1, limit=4
    $region2: #{tpu_custom_call.1} parent=1 // loop_pre_header
      _
    $region3: #{tpu_custom_call.1} parent=1 // loop_header
      %s25 = sphi 0, %s29
      %p26 = scmp.ge.s32.totalorder %s25, 4
      %s32 = sphi 0, %s44
      %s33 = sphi 0, %s40
      %s34 = sphi 0, %s32
      %s35 = sphi 0, %s33
      %s36 = sphi 0, %s34
      %s37 = sphi 0, %s35
      %s49 = sphi 0, %s51
      %s52 = sphi 0, %s49
      %s53 = sphi 0, %s52
      %s69 = sphi 0, %s53
      %s75 = sphi 0, %s77
      %s78 = sphi 0, %s75
      %s79 = sphi 0, %s78
      %s95 = sphi 0, %s79
      %s99 = sphi 0, %s99
      %s101 = sphi 0, %s99
      %s102 = sphi 0, %s101
      %s116 = sphi 0, %s102
      %s120 = sphi 0, %s120
      %s122 = sphi 0, %s120
      %s123 = sphi 0, %s122
      %s137 = sphi 0, %s123
      %s141 = sphi 0, %s141
      %s143 = sphi 0, %s141
      %s144 = sphi 0, %s143
      %s158 = sphi 0, %s144
      %s162 = sphi 0, %s162
      %s164 = sphi 0, %s162
      %s165 = sphi 0, %s164
      %s179 = sphi 0, %s165
      %s183 = sphi 0, %s183
      %s185 = sphi 0, %s183
      %s186 = sphi 0, %s185
      %s200 = sphi 0, %s186
      %s206 = sphi 0, %s208
      %s209 = sphi 0, %s206
      %s210 = sphi 0, %s209
      %s226 = sphi 0, %s210
      %s234 = sphi 0, %s236
      %s237 = sphi 0, %s234
      %s238 = sphi 0, %s237
      %s254 = sphi 0, %s238
    $region4: #{tpu_custom_call.1} parent=1 // loop_header_branch
      %28 = sbr.rel (%p26) target = $region8
    $region5: #{tpu_custom_call.1} parent=1 // loop_body
      %s30 = ssub.s32 %s25, 1
      %s31 = ssub.s32 %s25, 2
      %s38 = sadd.s32 1, %s33
      %p39 = scmp.ge.s32.totalorder %s38, 1
      %s40 = scalar_select %p39, 0, %s38
      %s41 = sadd.s32 1, %s32
      %s42 = scalar_select %p39, %s41, %s32
      %p43 = scmp.ge.s32.totalorder %s42, 2
      %s44 = scalar_select %p43, 0, %s42
      %s45 = ssub.s32 %s32, %s44
      %s46 = ssub.s32 %s33, %s40
      %s47 = sor.u32 %s45, %s46
      %p48 = scmp.eq.s32.totalorder %s47, 0
      %s50 = sadd.s32 %s49, 1
      %s51 = scalar_select %p48, %s49, %s50
      %p54 = pneg %p48
      %p55 = scmp.eq.s32.totalorder %s25, 1
      %p56 = por %p54, %p55
      %p57 = scmp.ne.s32.totalorder %s49, %s52
      %p58 = scmp.eq.s32.totalorder %s25, 0
      %p59 = por %p57, %p58
      %p60 = scmp.ne.s32.totalorder %s49, %s52
      %p61 = scmp.eq.s32.totalorder %s30, 1
      %p62 = por %p60, %p61
      %p63 = scmp.ne.s32.totalorder %s52, %s53
      %p64 = scmp.eq.s32.totalorder %s30, 0
      %p65 = por %p63, %p64
      %p66 = scmp.ne.s32.totalorder %s52, %s53
      %p67 = scmp.eq.s32.totalorder %s31, 1
      %p68 = por %p66, %p67
      %p70 = scmp.ne.s32.totalorder %s53, %s69
      %p71 = scmp.eq.s32.totalorder %s31, 0
      %p72 = por %p70, %p71
      %s73 = ssub.s32 %s32, %s44
      %p74 = scmp.eq.s32.totalorder %s73, 0
      %s76 = sadd.s32 %s75, 1
      %s77 = scalar_select %p74, %s75, %s76
      %p80 = pneg %p74
      %p81 = scmp.eq.s32.totalorder %s25, 1
      %p82 = por %p80, %p81
      %p83 = scmp.ne.s32.totalorder %s75, %s78
      %p84 = scmp.eq.s32.totalorder %s25, 0
      %p85 = por %p83, %p84
      %p86 = scmp.ne.s32.totalorder %s75, %s78
      %p87 = scmp.eq.s32.totalorder %s30, 1
      %p88 = por %p86, %p87
      %p89 = scmp.ne.s32.totalorder %s78, %s79
      %p90 = scmp.eq.s32.totalorder %s30, 0
      %p91 = por %p89, %p90
      %p92 = scmp.ne.s32.totalorder %s78, %s79
      %p93 = scmp.eq.s32.totalorder %s31, 1
      %p94 = por %p92, %p93
      %p96 = scmp.ne.s32.totalorder %s79, %s95
      %p97 = scmp.eq.s32.totalorder %s31, 0
      %p98 = por %p96, %p97
      %s100 = sadd.s32 %s99, 1
      %p103 = scmp.eq.s32.totalorder %s25, 1
      %p104 = scmp.ne.s32.totalorder %s99, %s101
      %p105 = scmp.eq.s32.totalorder %s25, 0
      %p106 = por %p104, %p105
      %p107 = scmp.ne.s32.totalorder %s99, %s101
      %p108 = scmp.eq.s32.totalorder %s30, 1
      %p109 = por %p107, %p108
      %p110 = scmp.ne.s32.totalorder %s101, %s102
      %p111 = scmp.eq.s32.totalorder %s30, 0
      %p112 = por %p110, %p111
      %p113 = scmp.ne.s32.totalorder %s101, %s102
      %p114 = scmp.eq.s32.totalorder %s31, 1
      %p115 = por %p113, %p114
      %p117 = scmp.ne.s32.totalorder %s102, %s116
      %p118 = scmp.eq.s32.totalorder %s31, 0
      %p119 = por %p117, %p118
      %s121 = sadd.s32 %s120, 1
      %p124 = scmp.eq.s32.totalorder %s25, 1
      %p125 = scmp.ne.s32.totalorder %s120, %s122
      %p126 = scmp.eq.s32.totalorder %s25, 0
      %p127 = por %p125, %p126
      %p128 = scmp.ne.s32.totalorder %s120, %s122
      %p129 = scmp.eq.s32.totalorder %s30, 1
      %p130 = por %p128, %p129
      %p131 = scmp.ne.s32.totalorder %s122, %s123
      %p132 = scmp.eq.s32.totalorder %s30, 0
      %p133 = por %p131, %p132
      %p134 = scmp.ne.s32.totalorder %s122, %s123
      %p135 = scmp.eq.s32.totalorder %s31, 1
      %p136 = por %p134, %p135
      %p138 = scmp.ne.s32.totalorder %s123, %s137
      %p139 = scmp.eq.s32.totalorder %s31, 0
      %p140 = por %p138, %p139
      %s142 = sadd.s32 %s141, 1
      %p145 = scmp.eq.s32.totalorder %s25, 1
      %p146 = scmp.ne.s32.totalorder %s141, %s143
      %p147 = scmp.eq.s32.totalorder %s25, 0
      %p148 = por %p146, %p147
      %p149 = scmp.ne.s32.totalorder %s141, %s143
      %p150 = scmp.eq.s32.totalorder %s30, 1
      %p151 = por %p149, %p150
      %p152 = scmp.ne.s32.totalorder %s143, %s144
      %p153 = scmp.eq.s32.totalorder %s30, 0
      %p154 = por %p152, %p153
      %p155 = scmp.ne.s32.totalorder %s143, %s144
      %p156 = scmp.eq.s32.totalorder %s31, 1
      %p157 = por %p155, %p156
      %p159 = scmp.ne.s32.totalorder %s144, %s158
      %p160 = scmp.eq.s32.totalorder %s31, 0
      %p161 = por %p159, %p160
      %s163 = sadd.s32 %s162, 1
      %p166 = scmp.eq.s32.totalorder %s25, 1
      %p167 = scmp.ne.s32.totalorder %s162, %s164
      %p168 = scmp.eq.s32.totalorder %s25, 0
      %p169 = por %p167, %p168
      %p170 = scmp.ne.s32.totalorder %s162, %s164
      %p171 = scmp.eq.s32.totalorder %s30, 1
      %p172 = por %p170, %p171
      %p173 = scmp.ne.s32.totalorder %s164, %s165
      %p174 = scmp.eq.s32.totalorder %s30, 0
      %p175 = por %p173, %p174
      %p176 = scmp.ne.s32.totalorder %s164, %s165
      %p177 = scmp.eq.s32.totalorder %s31, 1
      %p178 = por %p176, %p177
      %p180 = scmp.ne.s32.totalorder %s165, %s179
      %p181 = scmp.eq.s32.totalorder %s31, 0
      %p182 = por %p180, %p181
      %s184 = sadd.s32 %s183, 1
      %p187 = scmp.eq.s32.totalorder %s25, 1
      %p188 = scmp.ne.s32.totalorder %s183, %s185
      %p189 = scmp.eq.s32.totalorder %s25, 0
      %p190 = por %p188, %p189
      %p191 = scmp.ne.s32.totalorder %s183, %s185
      %p192 = scmp.eq.s32.totalorder %s30, 1
      %p193 = por %p191, %p192
      %p194 = scmp.ne.s32.totalorder %s185, %s186
      %p195 = scmp.eq.s32.totalorder %s30, 0
      %p196 = por %p194, %p195
      %p197 = scmp.ne.s32.totalorder %s185, %s186
      %p198 = scmp.eq.s32.totalorder %s31, 1
      %p199 = por %p197, %p198
      %p201 = scmp.ne.s32.totalorder %s186, %s200
      %p202 = scmp.eq.s32.totalorder %s31, 0
      %p203 = por %p201, %p202
      %s204 = ssub.s32 %s33, %s40
      %p205 = scmp.eq.s32.totalorder %s204, 0
      %s207 = sadd.s32 %s206, 1
      %s208 = scalar_select %p205, %s206, %s207
      %p211 = pneg %p205
      %p212 = scmp.eq.s32.totalorder %s25, 1
      %p213 = por %p211, %p212
      %p214 = scmp.ne.s32.totalorder %s206, %s209
      %p215 = scmp.eq.s32.totalorder %s25, 0
      %p216 = por %p214, %p215
      %p217 = scmp.ne.s32.totalorder %s206, %s209
      %p218 = scmp.eq.s32.totalorder %s30, 1
      %p219 = por %p217, %p218
      %p220 = scmp.ne.s32.totalorder %s209, %s210
      %p221 = scmp.eq.s32.totalorder %s30, 0
      %p222 = por %p220, %p221
      %p223 = scmp.ne.s32.totalorder %s209, %s210
      %p224 = scmp.eq.s32.totalorder %s31, 1
      %p225 = por %p223, %p224
      %p227 = scmp.ne.s32.totalorder %s210, %s226
      %p228 = scmp.eq.s32.totalorder %s31, 0
      %p229 = por %p227, %p228
      %s230 = ssub.s32 %s32, %s44
      %s231 = ssub.s32 %s33, %s40
      %s232 = sor.u32 %s230, %s231
      %p233 = scmp.eq.s32.totalorder %s232, 0
      %s235 = sadd.s32 %s234, 1
      %s236 = scalar_select %p233, %s234, %s235
      %p239 = pneg %p233
      %p240 = scmp.eq.s32.totalorder %s25, 1
      %p241 = por %p239, %p240
      %p242 = scmp.ne.s32.totalorder %s234, %s237
      %p243 = scmp.eq.s32.totalorder %s25, 0
      %p244 = por %p242, %p243
      %p245 = scmp.ne.s32.totalorder %s234, %s237
      %p246 = scmp.eq.s32.totalorder %s30, 1
      %p247 = por %p245, %p246
      %p248 = scmp.ne.s32.totalorder %s237, %s238
      %p249 = scmp.eq.s32.totalorder %s30, 0
      %p250 = por %p248, %p249
      %p251 = scmp.ne.s32.totalorder %s237, %s238
      %p252 = scmp.eq.s32.totalorder %s31, 1
      %p253 = por %p251, %p252
      %p255 = scmp.ne.s32.totalorder %s238, %s254
      %p256 = scmp.eq.s32.totalorder %s31, 0
      %p257 = por %p255, %p256
      %p258 = scmp.le.s32.totalorder 1, %s25
      %p259 = scmp.lt.s32.totalorder %s25, 3
      %p260 = pnand %p258, %p259
      %p261 = pneg %p260
      // Predicated region
      $region9: #{tpu_custom_call.1} parent=5 // pred_check
        _
      $region10: #{tpu_custom_call.1} parent=5 // pred_check_branch
        %263 = sbr.rel (%p260) target = $region12
      $region11: #{tpu_custom_call.1} parent=5 // pred_region
        %s264 = ssub.s32 %s25, 1
        // Predicated region
        $region13: #{tpu_custom_call.1} parent=11 // pred_check
          %p265 = pneg %p112
        $region14: #{tpu_custom_call.1} parent=11 // pred_check_branch
          %267 = sbr.rel (%p265) target = $region16
        $region15: #{tpu_custom_call.1} parent=11 // pred_region
          _
        $region16: #{tpu_custom_call.1} parent=11 // pred_fallthru
          _
        // Predicated region
        $region17: #{tpu_custom_call.1} parent=11 // pred_check
          %p268 = pneg %p133
        $region18: #{tpu_custom_call.1} parent=11 // pred_check_branch
          %270 = sbr.rel (%p268) target = $region20
        $region19: #{tpu_custom_call.1} parent=11 // pred_region
          %272 = vsyncadd [#allocation9], 0
          %s273 = sshll.u32 %s3, 4
          %s274 = int_to_ptr.hbm [resolvable:$true] %s273
          %s275 = sshll.u32 [#allocation10], 4
          %s276 = int_to_ptr.vmem [resolvable:$true] %s275
          %281 = dma.hbm_to_vmem [thread:$0]  %s274, 2048, %s276, [#allocation9], 128, 128, 8
        $region20: #{tpu_custom_call.1} parent=11 // pred_fallthru
          _
        // Predicated region
        $region21: #{tpu_custom_call.1} parent=11 // pred_check
          %p282 = pneg %p154
        $region22: #{tpu_custom_call.1} parent=11 // pred_check_branch
          %284 = sbr.rel (%p282) target = $region24
        $region23: #{tpu_custom_call.1} parent=11 // pred_region
          %286 = vsyncadd [#allocation12], 0
          %s287 = sshll.u32 %s4, 4
          %s288 = int_to_ptr.hbm [resolvable:$true] %s287
          %s289 = sshll.u32 [#allocation11], 4
          %s290 = int_to_ptr.vmem [resolvable:$true] %s289
          %295 = dma.hbm_to_vmem [thread:$0]  %s288, 2048, %s290, [#allocation12], 128, 128, 8
        $region24: #{tpu_custom_call.1} parent=11 // pred_fallthru
          _
        // Predicated region
        $region25: #{tpu_custom_call.1} parent=11 // pred_check
          %p296 = pneg %p175
        $region26: #{tpu_custom_call.1} parent=11 // pred_check_branch
          %298 = sbr.rel (%p296) target = $region28
        $region27: #{tpu_custom_call.1} parent=11 // pred_region
          %300 = vsyncadd [#allocation12], 0
          %s301 = sshll.u32 %s5, 4
          %s302 = int_to_ptr.hbm [resolvable:$true] %s301
          %s303 = sshll.u32 [#allocation13], 4
          %s304 = int_to_ptr.vmem [resolvable:$true] %s303
          %309 = dma.hbm_to_vmem [thread:$0]  %s302, 2048, %s304, [#allocation12], 128, 128, 8
        $region28: #{tpu_custom_call.1} parent=11 // pred_fallthru
          _
        // Predicated region
        $region29: #{tpu_custom_call.1} parent=11 // pred_check
          %p310 = pneg %p196
        $region30: #{tpu_custom_call.1} parent=11 // pred_check_branch
          %312 = sbr.rel (%p310) target = $region32
        $region31: #{tpu_custom_call.1} parent=11 // pred_region
          %314 = vsyncadd [#allocation15], 0
          %s315 = sshll.u32 %s6, 4
          %s316 = int_to_ptr.hbm [resolvable:$true] %s315
          %s317 = sshll.u32 [#allocation14], 4
          %s318 = int_to_ptr.vmem [resolvable:$true] %s317
          %323 = dma.hbm_to_vmem [thread:$0]  %s316, 2048, %s318, [#allocation15], 128, 128, 8
        $region32: #{tpu_custom_call.1} parent=11 // pred_fallthru
          _
        // Predicated region
        $region33: #{tpu_custom_call.1} parent=11 // pred_check
          %p324 = pneg %p222
        $region34: #{tpu_custom_call.1} parent=11 // pred_check_branch
          %326 = sbr.rel (%p324) target = $region36
        $region35: #{tpu_custom_call.1} parent=11 // pred_region
          %328 = vsyncadd [#allocation15], 0
          %s329 = smul.addr %s35, 8
          %s330 = scalar_lea.hbm %s7, %s329
          %s331 = sshll.u32 %s330, 4
          %s332 = int_to_ptr.hbm [resolvable:$true] %s331
          %s333 = sshll.u32 [#allocation16], 4
          %s334 = int_to_ptr.vmem [resolvable:$true] %s333
          %339 = dma.hbm_to_vmem [thread:$0]  %s332, 512, %s334, [#allocation15], 128, 128, 8
        $region36: #{tpu_custom_call.1} parent=11 // pred_fallthru
          _
      $region12: #{tpu_custom_call.1} parent=5 // pred_fallthru
        _
      %p340 = scmp.lt.s32.totalorder %s25, 2
      // Predicated region
      $region37: #{tpu_custom_call.1} parent=5 // pred_check
        %p341 = pneg %p340
      $region38: #{tpu_custom_call.1} parent=5 // pred_check_branch
        %343 = sbr.rel (%p341) target = $region40
      $region39: #{tpu_custom_call.1} parent=5 // pred_region
        // Predicated region
        $region41: #{tpu_custom_call.1} parent=39 // pred_check
          %p344 = pneg %p59
        $region42: #{tpu_custom_call.1} parent=39 // pred_check_branch
          %346 = sbr.rel (%p344) target = $region44
        $region43: #{tpu_custom_call.1} parent=39 // pred_region
          %s347 = sand.u32 %s49, 1
          %s348 = scalar_lea.sflag [#allocation6], %s347
          %s349 = sand.u32 %s49, 1
          %s350 = smul.addr %s349, 8
          %s351 = scalar_lea.vmem [#allocation5], %s350
          %353 = vsyncadd %s348, 0
          %s354 = sadd.s32 %s33, %s32
          %s355 = smul.addr %s354, 8
          %s356 = scalar_lea.hbm %s0, %s355
          %s358 = sshll.u32 %s356, 4
          %s359 = int_to_ptr.hbm [resolvable:$true] %s358
          %s360 = sshll.u32 %s351, 4
          %s361 = int_to_ptr.vmem [resolvable:$true] %s360
          %363 = dma.hbm_to_vmem [thread:$0]  %s359, 128, %s361, %s348
        $region44: #{tpu_custom_call.1} parent=39 // pred_fallthru
          _
        // Predicated region
        $region45: #{tpu_custom_call.1} parent=39 // pred_check
          %p364 = pneg %p85
        $region46: #{tpu_custom_call.1} parent=39 // pred_check_branch
          %366 = sbr.rel (%p364) target = $region48
        $region47: #{tpu_custom_call.1} parent=39 // pred_region
          %s367 = sand.u32 %s25, 1
          %s368 = scalar_lea.sflag [#allocation9], %s367
          %s369 = sand.u32 %s75, 1
          %s370 = smul.addr %s369, 16
          %s371 = scalar_lea.vmem [#allocation8], %s370
          %373 = vsyncadd %s368, 0
          %s374 = smul.addr %s32, 2
          %s375 = smul.addr %s374, 8
          %s376 = scalar_lea.hbm %s1, %s375
          %s377 = sshll.u32 %s376, 4
          %s378 = int_to_ptr.hbm [resolvable:$true] %s377
          %s379 = sshll.u32 %s371, 4
          %s380 = int_to_ptr.vmem [resolvable:$true] %s379
          %385 = dma.hbm_to_vmem [thread:$0]  %s378, 256, %s380, %s368, 128, 128, 8
        $region48: #{tpu_custom_call.1} parent=39 // pred_fallthru
          _
      $region40: #{tpu_custom_call.1} parent=5 // pred_fallthru
        _
      %p386 = scmp.le.s32.totalorder 1, %s25
      %p387 = scmp.lt.s32.totalorder %s25, 3
      %p388 = pnand %p386, %p387
      %p389 = pneg %p388
      // Predicated region
      $region49: #{tpu_custom_call.1} parent=5 // pred_check
        _
      $region50: #{tpu_custom_call.1} parent=5 // pred_check_branch
        %391 = sbr.rel (%p388) target = $region52
      $region51: #{tpu_custom_call.1} parent=5 // pred_region
        %s392 = ssub.s32 %s25, 1
        %s393 = sand.u32 %s52, 1
        %s394 = scalar_lea.sflag [#allocation6], %s393
        %s395 = sand.u32 %s52, 1
        %s396 = smul.addr %s395, 8
        %s397 = scalar_lea.vmem [#allocation5], %s396
        // Predicated region
        $region53: #{tpu_custom_call.1} parent=51 // pred_check
          %p398 = pneg %p65
        $region54: #{tpu_custom_call.1} parent=51 // pred_check_branch
          %400 = sbr.rel (%p398) target = $region56
        $region55: #{tpu_custom_call.1} parent=51 // pred_region
          %402 = dma.done %s394, 128
        $region56: #{tpu_custom_call.1} parent=51 // pred_fallthru
          _
        %s403 = sand.u32 %s30, 1
        %s404 = scalar_lea.sflag [#allocation9], %s403
        %s405 = sand.u32 %s78, 1
        %s406 = smul.addr %s405, 16
        %s407 = scalar_lea.vmem [#allocation8], %s406
        // Predicated region
        $region57: #{tpu_custom_call.1} parent=51 // pred_check
          %p408 = pneg %p91
        $region58: #{tpu_custom_call.1} parent=51 // pred_check_branch
          %410 = sbr.rel (%p408) target = $region60
        $region59: #{tpu_custom_call.1} parent=51 // pred_region
          %412 = dma.done %s404, 256
        $region60: #{tpu_custom_call.1} parent=51 // pred_fallthru
          _
        // Predicated region
        $region61: #{tpu_custom_call.1} parent=51 // pred_check
          %p413 = pneg %p133
        $region62: #{tpu_custom_call.1} parent=51 // pred_check_branch
          %415 = sbr.rel (%p413) target = $region64
        $region63: #{tpu_custom_call.1} parent=51 // pred_region
          %417 = dma.done [#allocation9], 2048
        $region64: #{tpu_custom_call.1} parent=51 // pred_fallthru
          _
        // Predicated region
        $region65: #{tpu_custom_call.1} parent=51 // pred_check
          %p418 = pneg %p154
        $region66: #{tpu_custom_call.1} parent=51 // pred_check_branch
          %420 = sbr.rel (%p418) target = $region68
        $region67: #{tpu_custom_call.1} parent=51 // pred_region
          %422 = dma.done [#allocation12], 2048
        $region68: #{tpu_custom_call.1} parent=51 // pred_fallthru
          _
        // Predicated region
        $region69: #{tpu_custom_call.1} parent=51 // pred_check
          %p423 = pneg %p175
        $region70: #{tpu_custom_call.1} parent=51 // pred_check_branch
          %425 = sbr.rel (%p423) target = $region72
        $region71: #{tpu_custom_call.1} parent=51 // pred_region
          %427 = dma.done [#allocation12], 2048
        $region72: #{tpu_custom_call.1} parent=51 // pred_fallthru
          _
        // Predicated region
        $region73: #{tpu_custom_call.1} parent=51 // pred_check
          %p428 = pneg %p196
        $region74: #{tpu_custom_call.1} parent=51 // pred_check_branch
          %430 = sbr.rel (%p428) target = $region76
        $region75: #{tpu_custom_call.1} parent=51 // pred_region
          %432 = dma.done [#allocation15], 2048
        $region76: #{tpu_custom_call.1} parent=51 // pred_fallthru
          _
        // Predicated region
        $region77: #{tpu_custom_call.1} parent=51 // pred_check
          %p433 = pneg %p222
        $region78: #{tpu_custom_call.1} parent=51 // pred_check_branch
          %435 = sbr.rel (%p433) target = $region80
        $region79: #{tpu_custom_call.1} parent=51 // pred_region
          %437 = dma.done [#allocation15], 512
        $region80: #{tpu_custom_call.1} parent=51 // pred_fallthru
          _
        %s438 = sand.u32 %s52, 1
        %s439 = scalar_lea.sflag [#allocation6], %s438
        %s440 = sand.u32 %s52, 1
        %s441 = smul.addr %s440, 8
        %s442 = scalar_lea.vmem [#allocation5], %s441
        %p443 = pneg %p65
        %p444 = pneg %p62
        %s445 = sand.u32 %s30, 1
        %s446 = scalar_lea.sflag [#allocation9], %s445
        %s447 = sand.u32 %s78, 1
        %s448 = smul.addr %s447, 16
        %s449 = scalar_lea.vmem [#allocation8], %s448
        %p450 = pneg %p91
        %p451 = pneg %p88
        %p452 = pneg %p112
        %p453 = pneg %p109
        %p454 = pneg %p133
        %p455 = pneg %p130
        %p456 = pneg %p154
        %p457 = pneg %p151
        %p458 = pneg %p175
        %p459 = pneg %p172
        %p460 = pneg %p196
        %p461 = pneg %p193
        %p462 = pneg %p222
        %p463 = pneg %p219
        %p464 = pneg %p250
        %p465 = pneg %p247
        %s466 = sand.u32 %s237, 1
        %s467 = scalar_lea.sflag [#allocation7], %s466
        %s468 = sand.u32 %s237, 1
        %s469 = smul.addr %s468, 8
        %s470 = scalar_lea.vmem [#allocation17], %s469
        %p471 = scmp.eq.s32.totalorder %s35, 0
        // Predicated region
        $region81: #{tpu_custom_call.1} parent=51 // pred_check
          %p472 = pneg %p471
        $region82: #{tpu_custom_call.1} parent=51 // pred_check_branch
          %474 = sbr.rel (%p472) target = $region84
        $region83: #{tpu_custom_call.1} parent=51 // pred_region
          %v475 = vld [vmem:[%s407] sm:$0xff]
          %v476 = vld [vmem:[%s407 + $0x8] sm:$0xff]
          %v477 = vld [vmem:[#allocation11] sm:$0xff]
          %v478 = vld [vmem:[#allocation11 + $0x8] sm:$0xff]
          %v479 = vld [vmem:[#allocation11 + $0x10] sm:$0xff]
          %v480 = vld [vmem:[#allocation11 + $0x18] sm:$0xff]
          %v481 = vld [vmem:[#allocation11 + $0x20] sm:$0xff]
          %v482 = vld [vmem:[#allocation11 + $0x28] sm:$0xff]
          %v483 = vld [vmem:[#allocation11 + $0x30] sm:$0xff]
          %v484 = vld [vmem:[#allocation11 + $0x38] sm:$0xff]
          %v485 = vld [vmem:[#allocation11 + $0x40] sm:$0xff]
          %v486 = vld [vmem:[#allocation11 + $0x48] sm:$0xff]
          %v487 = vld [vmem:[#allocation11 + $0x50] sm:$0xff]
          %v488 = vld [vmem:[#allocation11 + $0x58] sm:$0xff]
          %v489 = vld [vmem:[#allocation11 + $0x60] sm:$0xff]
          %v490 = vld [vmem:[#allocation11 + $0x68] sm:$0xff]
          %v491 = vld [vmem:[#allocation11 + $0x70] sm:$0xff]
          %v492 = vld [vmem:[#allocation11 + $0x78] sm:$0xff]
          %493 = vmatpush.xpose.msra.mxu0 %v492
          %494 = vmatpush.xpose.msra.mxu0 %v491
          %495 = vmatpush.xpose.msra.mxu0 %v490
          %496 = vmatpush.xpose.msra.mxu0 %v489
          %497 = vmatpush.xpose.msra.mxu0 %v488
          %498 = vmatpush.xpose.msra.mxu0 %v487
          %499 = vmatpush.xpose.msra.mxu0 %v486
          %500 = vmatpush.xpose.msra.mxu0 %v485
          %501 = vmatpush.xpose.msra.mxu0 %v484
          %502 = vmatpush.xpose.msra.mxu0 %v483
          %503 = vmatpush.xpose.msra.mxu0 %v482
          %504 = vmatpush.xpose.msra.mxu0 %v481
          %505 = vmatpush.xpose.msra.mxu0 %v480
          %506 = vmatpush.xpose.msra.mxu0 %v479
          %507 = vmatpush.xpose.msra.mxu0 %v478
          %508 = vmatpush.xpose.msra.mxu0 %v477
          %509 = vmatmul.f32.gmra.mxu0 %v475
          %v510 = vpop.f32.mrf.mxu0
          %v511 = vadd.f32 0.0, %v510
          %512 = vmatmul.f32.gmra.mxu0 %v476
          %v513 = vpop.f32.mrf.mxu0
          %v514 = vadd.f32 0.0, %v513
          %515 = vdwg.mxu0
          %516 = vst [vmem:[#allocation2] sm:$0xff] %v511
          %517 = vst [vmem:[#allocation2 + $0x8] sm:$0xff] %v514
          %v518 = vld [vmem:[#allocation13] sm:$0xff]
          %v519 = vld [vmem:[#allocation13 + $0x8] sm:$0xff]
          %v520 = vld [vmem:[#allocation13 + $0x10] sm:$0xff]
          %v521 = vld [vmem:[#allocation13 + $0x18] sm:$0xff]
          %v522 = vld [vmem:[#allocation13 + $0x20] sm:$0xff]
          %v523 = vld [vmem:[#allocation13 + $0x28] sm:$0xff]
          %v524 = vld [vmem:[#allocation13 + $0x30] sm:$0xff]
          %v525 = vld [vmem:[#allocation13 + $0x38] sm:$0xff]
          %v526 = vld [vmem:[#allocation13 + $0x40] sm:$0xff]
          %v527 = vld [vmem:[#allocation13 + $0x48] sm:$0xff]
          %v528 = vld [vmem:[#allocation13 + $0x50] sm:$0xff]
          %v529 = vld [vmem:[#allocation13 + $0x58] sm:$0xff]
          %v530 = vld [vmem:[#allocation13 + $0x60] sm:$0xff]
          %v531 = vld [vmem:[#allocation13 + $0x68] sm:$0xff]
          %v532 = vld [vmem:[#allocation13 + $0x70] sm:$0xff]
          %v533 = vld [vmem:[#allocation13 + $0x78] sm:$0xff]
          %534 = vmatpush.xpose.msra.mxu0 %v533
          %535 = vmatpush.xpose.msra.mxu0 %v532
          %536 = vmatpush.xpose.msra.mxu0 %v531
          %537 = vmatpush.xpose.msra.mxu0 %v530
          %538 = vmatpush.xpose.msra.mxu0 %v529
          %539 = vmatpush.xpose.msra.mxu0 %v528
          %540 = vmatpush.xpose.msra.mxu0 %v527
          %541 = vmatpush.xpose.msra.mxu0 %v526
          %542 = vmatpush.xpose.msra.mxu0 %v525
          %543 = vmatpush.xpose.msra.mxu0 %v524
          %544 = vmatpush.xpose.msra.mxu0 %v523
          %545 = vmatpush.xpose.msra.mxu0 %v522
          %546 = vmatpush.xpose.msra.mxu0 %v521
          %547 = vmatpush.xpose.msra.mxu0 %v520
          %548 = vmatpush.xpose.msra.mxu0 %v519
          %549 = vmatpush.xpose.msra.mxu0 %v518
          %550 = vmatmul.f32.gmra.mxu0 %v475
          %v551 = vpop.f32.mrf.mxu0
          %v552 = vadd.f32 0.0, %v551
          %553 = vmatmul.f32.gmra.mxu0 %v476
          %v554 = vpop.f32.mrf.mxu0
          %v555 = vadd.f32 0.0, %v554
          %556 = vdwg.mxu0
          %557 = vst [vmem:[#allocation3] sm:$0xff] %v552
          %558 = vst [vmem:[#allocation3 + $0x8] sm:$0xff] %v555
        $region84: #{tpu_custom_call.1} parent=51 // pred_fallthru
          _
        %v559 = vld [vmem:[%s397] sm:$0xff]
        %v560 = vmul.f32 %v559, %v559
        %561 = vadd.xlane.f32.xlu0 %v560
        %v562 = vpop.xlane.xlu0 %561
        %v563 = vrcp.pop 128.0
        %v564 = vmul.f32 128.0, %v563
        %v565 = vsub.f32 1.0, %v564
        %v566 = vmul.f32 %v563, %v565
        %v567 = vadd.f32 %v563, %v566
        %vm568 = vweird.f32 %v563
        %v569 = vsel %vm568, %v563, %v567
        %v570 = vmul.f32 %v562, %v569
        %v571 = vadd.f32 %v570, 1e-06
        %v572 = vrsqrt.pop %v571
        %v573 = vmul.f32 %v572, %v571
        %v574 = vmul.f32 %v573, %v572
        %v575 = vmul.f32 0.5, %v574
        %v576 = vsub.f32 1.5, %v575
        %v577 = vmul.f32 %v572, %v576
        %vm578 = vweird.f32 %v571
        %vm579 = vweird.f32 %v572
        %vm580 = vmor %vm578, %vm579
        %v581 = vsel %vm580, %v572, %v577
        %v582 = vmul.f32 %v559, %v581
        %v583 = vld [vmem:[%s2] sm:$0x1]
        %v585 = vperm.slane %v583, 0
        %v587 = vmul.f32 %v582, %v585
        %v588 = vld [vmem:[#allocation10] sm:$0xff]
        %v589 = vld [vmem:[#allocation10 + $0x8] sm:$0xff]
        %v590 = vld [vmem:[#allocation10 + $0x10] sm:$0xff]
        %v591 = vld [vmem:[#allocation10 + $0x18] sm:$0xff]
        %v592 = vld [vmem:[#allocation10 + $0x20] sm:$0xff]
        %v593 = vld [vmem:[#allocation10 + $0x28] sm:$0xff]
        %v594 = vld [vmem:[#allocation10 + $0x30] sm:$0xff]
        %v595 = vld [vmem:[#allocation10 + $0x38] sm:$0xff]
        %v596 = vld [vmem:[#allocation10 + $0x40] sm:$0xff]
        %v597 = vld [vmem:[#allocation10 + $0x48] sm:$0xff]
        %v598 = vld [vmem:[#allocation10 + $0x50] sm:$0xff]
        %v599 = vld [vmem:[#allocation10 + $0x58] sm:$0xff]
        %v600 = vld [vmem:[#allocation10 + $0x60] sm:$0xff]
        %v601 = vld [vmem:[#allocation10 + $0x68] sm:$0xff]
        %v602 = vld [vmem:[#allocation10 + $0x70] sm:$0xff]
        %v603 = vld [vmem:[#allocation10 + $0x78] sm:$0xff]
        %604 = vmatpush.xpose.msra.mxu0 %v603
        %605 = vmatpush.xpose.msra.mxu0 %v602
        %606 = vmatpush.xpose.msra.mxu0 %v601
        %607 = vmatpush.xpose.msra.mxu0 %v600
        %608 = vmatpush.xpose.msra.mxu0 %v599
        %609 = vmatpush.xpose.msra.mxu0 %v598
        %610 = vmatpush.xpose.msra.mxu0 %v597
        %611 = vmatpush.xpose.msra.mxu0 %v596
        %612 = vmatpush.xpose.msra.mxu0 %v595
        %613 = vmatpush.xpose.msra.mxu0 %v594
        %614 = vmatpush.xpose.msra.mxu0 %v593
        %615 = vmatpush.xpose.msra.mxu0 %v592
        %616 = vmatpush.xpose.msra.mxu0 %v591
        %617 = vmatpush.xpose.msra.mxu0 %v590
        %618 = vmatpush.xpose.msra.mxu0 %v589
        %619 = vmatpush.xpose.msra.mxu0 %v588
        %620 = vmatmul.f32.gmra.mxu0 %v587
        %v621 = vpop.f32.mrf.mxu0
        %v622 = vadd.f32 0.0, %v621
        %623 = vdwg.mxu0
        %v624 = vld [vmem:[#allocation2] sm:$0xff]
        %v625 = vld [vmem:[#allocation2 + $0x8] sm:$0xff]
        %v626 = vld [vmem:[#allocation3] sm:$0xff]
        %v627 = vld [vmem:[#allocation3 + $0x8] sm:$0xff]
        %v628 = vld [vmem:[#allocation16] sm:$0xff]
        %vm629 = vcmask 261120
        %v631 = vsel %vm629, %v622, 0
        %v634 = vsel %vm629, %v624, 0
        %v637 = vsel %vm629, %v625, 0
        %639 = vmatpush.xpose.msra.mxu0 0.0
        %640 = vmatpush.xpose.msra.mxu0 0.0
        %641 = vmatpush.xpose.msra.mxu0 0.0
        %642 = vmatpush.xpose.msra.mxu0 0.0
        %643 = vmatpush.xpose.msra.mxu0 0.0
        %644 = vmatpush.xpose.msra.mxu0 0.0
        %645 = vmatpush.xpose.msra.mxu0 0.0
        %646 = vmatpush.xpose.msra.mxu0 0.0
        %647 = vmatpush.xpose.msra.mxu0 0.0
        %648 = vmatpush.xpose.msra.mxu0 0.0
        %649 = vmatpush.xpose.msra.mxu0 0.0
        %650 = vmatpush.xpose.msra.mxu0 0.0
        %651 = vmatpush.xpose.msra.mxu0 0.0
        %652 = vmatpush.xpose.msra.mxu0 0.0
        %653 = vmatpush.xpose.msra.mxu0 %v637
        %654 = vmatpush.xpose.msra.mxu0 %v634
        %655 = vmatmul.f32.gmra.mxu0 %v631
        %v656 = vpop.f32.mrf.mxu0
        %v657 = vadd.f32 %v628, %v656
        %658 = vdwg.mxu0
        %vm659 = vcmask 130048
        %v660 = vsel %vm659, %v657, -inf
        %661 = vmax.xlane.f32.xlu0 %v660
        %v662 = vpop.xlane.xlu0 %661
        %v663 = vsub.f32 %v657, %v662
        %v664 = vmul.f32 %v663, 1.442695
        %v665 = vpow.pop %v664
        %v666 = vsel %vm659, %v665, 0.0
        %667 = vadd.xlane.f32.xlu0 %v666
        %v668 = vpop.xlane.xlu0 %667
        %v669 = vrcp.pop %v668
        %v670 = vmul.f32 %v668, %v669
        %v671 = vsub.f32 1.0, %v670
        %v672 = vmul.f32 %v669, %v671
        %v673 = vadd.f32 %v669, %v672
        %vm674 = vweird.f32 %v668
        %vm675 = vweird.f32 %v669
        %vm676 = vmor %vm674, %vm675
        %v677 = vsel %vm676, %v669, %v673
        %v678 = vand.u32 2147483647, %v668
        %vm679 = vcmp.eq.f32.partialorder %v678, 8.507059e+37
        %v680 = vand.u32 %v668, 2147483648
        %v681 = vor.u32 1.1754944e-38, %v680
        %v682 = vsel %vm679, %v681, %v677
        %v683 = vmul.f32 %v665, %v682
        %v685 = vsel %vm659, %v683, 0
        %687 = vmatpush.msra.mxu0 0.0
        %688 = vmatpush.msra.mxu0 0.0
        %689 = vmatpush.msra.mxu0 0.0
        %690 = vmatpush.msra.mxu0 0.0
        %691 = vmatpush.msra.mxu0 0.0
        %692 = vmatpush.msra.mxu0 0.0
        %693 = vmatpush.msra.mxu0 0.0
        %694 = vmatpush.msra.mxu0 0.0
        %695 = vmatpush.msra.mxu0 0.0
        %696 = vmatpush.msra.mxu0 0.0
        %697 = vmatpush.msra.mxu0 0.0
        %698 = vmatpush.msra.mxu0 0.0
        %699 = vmatpush.msra.mxu0 0.0
        %700 = vmatpush.msra.mxu0 0.0
        %701 = vmatpush.msra.mxu0 %v627
        %702 = vmatpush.msra.mxu0 %v626
        %703 = vmatmul.f32.gmra.mxu0 %v685
        %v704 = vpop.f32.mrf.mxu0
        %v705 = vadd.f32 0.0, %v704
        %706 = vdwg.mxu0
        %707 = vst.msk [vmem:[#allocation4] sm:$0xff] %vm629, %v705
        %s708 = scalar_lea.vmem [#allocation16], 8
        %v709 = vld [vmem:[%s708] sm:$0xff]
        %710 = vrot.lane.b32.xlu0 %v622, 96
        %v711 = vpop.permute.xlu0 %710
        %712 = vrot.lane.b32.xlu0 %v624, 96
        %v713 = vpop.permute.xlu0 %712
        %714 = vrot.lane.b32.xlu0 %v625, 96
        %v715 = vpop.permute.xlu0 %714
        %v716 = vsel %vm629, %v711, 0
        %v718 = vsel %vm629, %v713, 0
        %v720 = vsel %vm629, %v715, 0
        %722 = vmatpush.xpose.msra.mxu0 0.0
        %723 = vmatpush.xpose.msra.mxu0 0.0
        %724 = vmatpush.xpose.msra.mxu0 0.0
        %725 = vmatpush.xpose.msra.mxu0 0.0
        %726 = vmatpush.xpose.msra.mxu0 0.0
        %727 = vmatpush.xpose.msra.mxu0 0.0
        %728 = vmatpush.xpose.msra.mxu0 0.0
        %729 = vmatpush.xpose.msra.mxu0 0.0
        %730 = vmatpush.xpose.msra.mxu0 0.0
        %731 = vmatpush.xpose.msra.mxu0 0.0
        %732 = vmatpush.xpose.msra.mxu0 0.0
        %733 = vmatpush.xpose.msra.mxu0 0.0
        %734 = vmatpush.xpose.msra.mxu0 0.0
        %735 = vmatpush.xpose.msra.mxu0 0.0
        %736 = vmatpush.xpose.msra.mxu0 %v720
        %737 = vmatpush.xpose.msra.mxu0 %v718
        %738 = vmatmul.f32.gmra.mxu0 %v716
        %v739 = vpop.f32.mrf.mxu0
        %v740 = vadd.f32 %v709, %v739
        %741 = vdwg.mxu0
        %v742 = vsel %vm659, %v740, -inf
        %743 = vmax.xlane.f32.xlu0 %v742
        %v744 = vpop.xlane.xlu0 %743
        %v745 = vsub.f32 %v740, %v744
        %v746 = vmul.f32 %v745, 1.442695
        %v747 = vpow.pop %v746
        %v748 = vsel %vm659, %v747, 0.0
        %749 = vadd.xlane.f32.xlu0 %v748
        %v750 = vpop.xlane.xlu0 %749
        %v751 = vrcp.pop %v750
        %v752 = vmul.f32 %v750, %v751
        %v753 = vsub.f32 1.0, %v752
        %v754 = vmul.f32 %v751, %v753
        %v755 = vadd.f32 %v751, %v754
        %vm756 = vweird.f32 %v750
        %vm757 = vweird.f32 %v751
        %vm758 = vmor %vm756, %vm757
        %v759 = vsel %vm758, %v751, %v755
        %v760 = vand.u32 2147483647, %v750
        %vm761 = vcmp.eq.f32.partialorder %v760, 8.507059e+37
        %v762 = vand.u32 %v750, 2147483648
        %v763 = vor.u32 1.1754944e-38, %v762
        %v764 = vsel %vm761, %v763, %v759
        %v765 = vmul.f32 %v747, %v764
        %768 = vrot.lane.b32.xlu0 %v626, 96
        %v769 = vpop.permute.xlu0 %768
        %770 = vrot.lane.b32.xlu0 %v627, 96
        %v771 = vpop.permute.xlu0 %770
        %v775 = vsel %vm659, %v765, 0
        %777 = vmatpush.msra.mxu0 0.0
        %778 = vmatpush.msra.mxu0 0.0
        %779 = vmatpush.msra.mxu0 0.0
        %780 = vmatpush.msra.mxu0 0.0
        %781 = vmatpush.msra.mxu0 0.0
        %782 = vmatpush.msra.mxu0 0.0
        %783 = vmatpush.msra.mxu0 0.0
        %784 = vmatpush.msra.mxu0 0.0
        %785 = vmatpush.msra.mxu0 0.0
        %786 = vmatpush.msra.mxu0 0.0
        %787 = vmatpush.msra.mxu0 0.0
        %788 = vmatpush.msra.mxu0 0.0
        %789 = vmatpush.msra.mxu0 0.0
        %790 = vmatpush.msra.mxu0 0.0
        %791 = vmatpush.msra.mxu0 %v771
        %792 = vmatpush.msra.mxu0 %v769
        %793 = vmatmul.f32.gmra.mxu0 %v775
        %v794 = vpop.f32.mrf.mxu0
        %v795 = vadd.f32 0.0, %v794
        %796 = vdwg.mxu0
        %798 = vrot.lane.b32.xlu0 %v795, 32
        %v799 = vpop.permute.xlu0 %798
        %vm801 = vcmask 523520
        %802 = vst.msk [vmem:[#allocation4] sm:$0xff] %vm801, %v799
        %s803 = scalar_lea.vmem [#allocation16], 16
        %v804 = vld [vmem:[%s803] sm:$0xff]
        %805 = vrot.lane.b32.xlu0 %v622, 64
        %v806 = vpop.permute.xlu0 %805
        %807 = vrot.lane.b32.xlu0 %v624, 64
        %v808 = vpop.permute.xlu0 %807
        %809 = vrot.lane.b32.xlu0 %v625, 64
        %v810 = vpop.permute.xlu0 %809
        %v811 = vsel %vm629, %v806, 0
        %v813 = vsel %vm629, %v808, 0
        %v815 = vsel %vm629, %v810, 0
        %817 = vmatpush.xpose.msra.mxu0 0.0
        %818 = vmatpush.xpose.msra.mxu0 0.0
        %819 = vmatpush.xpose.msra.mxu0 0.0
        %820 = vmatpush.xpose.msra.mxu0 0.0
        %821 = vmatpush.xpose.msra.mxu0 0.0
        %822 = vmatpush.xpose.msra.mxu0 0.0
        %823 = vmatpush.xpose.msra.mxu0 0.0
        %824 = vmatpush.xpose.msra.mxu0 0.0
        %825 = vmatpush.xpose.msra.mxu0 0.0
        %826 = vmatpush.xpose.msra.mxu0 0.0
        %827 = vmatpush.xpose.msra.mxu0 0.0
        %828 = vmatpush.xpose.msra.mxu0 0.0
        %829 = vmatpush.xpose.msra.mxu0 0.0
        %830 = vmatpush.xpose.msra.mxu0 0.0
        %831 = vmatpush.xpose.msra.mxu0 %v815
        %832 = vmatpush.xpose.msra.mxu0 %v813
        %833 = vmatmul.f32.gmra.mxu0 %v811
        %v834 = vpop.f32.mrf.mxu0
        %v835 = vadd.f32 %v804, %v834
        %836 = vdwg.mxu0
        %v837 = vsel %vm659, %v835, -inf
        %838 = vmax.xlane.f32.xlu0 %v837
        %v839 = vpop.xlane.xlu0 %838
        %v840 = vsub.f32 %v835, %v839
        %v841 = vmul.f32 %v840, 1.442695
        %v842 = vpow.pop %v841
        %v843 = vsel %vm659, %v842, 0.0
        %844 = vadd.xlane.f32.xlu0 %v843
        %v845 = vpop.xlane.xlu0 %844
        %v846 = vrcp.pop %v845
        %v847 = vmul.f32 %v845, %v846
        %v848 = vsub.f32 1.0, %v847
        %v849 = vmul.f32 %v846, %v848
        %v850 = vadd.f32 %v846, %v849
        %vm851 = vweird.f32 %v845
        %vm852 = vweird.f32 %v846
        %vm853 = vmor %vm851, %vm852
        %v854 = vsel %vm853, %v846, %v850
        %v855 = vand.u32 2147483647, %v845
        %vm856 = vcmp.eq.f32.partialorder %v855, 8.507059e+37
        %v857 = vand.u32 %v845, 2147483648
        %v858 = vor.u32 1.1754944e-38, %v857
        %v859 = vsel %vm856, %v858, %v854
        %v860 = vmul.f32 %v842, %v859
        %861 = vrot.lane.b32.xlu0 %v626, 64
        %v862 = vpop.permute.xlu0 %861
        %863 = vrot.lane.b32.xlu0 %v627, 64
        %v864 = vpop.permute.xlu0 %863
        %v868 = vsel %vm659, %v860, 0
        %870 = vmatpush.msra.mxu0 0.0
        %871 = vmatpush.msra.mxu0 0.0
        %872 = vmatpush.msra.mxu0 0.0
        %873 = vmatpush.msra.mxu0 0.0
        %874 = vmatpush.msra.mxu0 0.0
        %875 = vmatpush.msra.mxu0 0.0
        %876 = vmatpush.msra.mxu0 0.0
        %877 = vmatpush.msra.mxu0 0.0
        %878 = vmatpush.msra.mxu0 0.0
        %879 = vmatpush.msra.mxu0 0.0
        %880 = vmatpush.msra.mxu0 0.0
        %881 = vmatpush.msra.mxu0 0.0
        %882 = vmatpush.msra.mxu0 0.0
        %883 = vmatpush.msra.mxu0 0.0
        %884 = vmatpush.msra.mxu0 %v864
        %885 = vmatpush.msra.mxu0 %v862
        %886 = vmatmul.f32.gmra.mxu0 %v868
        %v887 = vpop.f32.mrf.mxu0
        %v888 = vadd.f32 0.0, %v887
        %889 = vdwg.mxu0
        %891 = vrot.lane.b32.xlu0 %v888, 64
        %v892 = vpop.permute.xlu0 %891
        %vm894 = vcmask 785920
        %895 = vst.msk [vmem:[#allocation4] sm:$0xff] %vm894, %v892
        %s896 = scalar_lea.vmem [#allocation16], 24
        %v897 = vld [vmem:[%s896] sm:$0xff]
        %898 = vrot.lane.b32.xlu0 %v622, 32
        %v899 = vpop.permute.xlu0 %898
        %900 = vrot.lane.b32.xlu0 %v624, 32
        %v901 = vpop.permute.xlu0 %900
        %902 = vrot.lane.b32.xlu0 %v625, 32
        %v903 = vpop.permute.xlu0 %902
        %v904 = vsel %vm629, %v899, 0
        %v906 = vsel %vm629, %v901, 0
        %v908 = vsel %vm629, %v903, 0
        %910 = vmatpush.xpose.msra.mxu0 0.0
        %911 = vmatpush.xpose.msra.mxu0 0.0
        %912 = vmatpush.xpose.msra.mxu0 0.0
        %913 = vmatpush.xpose.msra.mxu0 0.0
        %914 = vmatpush.xpose.msra.mxu0 0.0
        %915 = vmatpush.xpose.msra.mxu0 0.0
        %916 = vmatpush.xpose.msra.mxu0 0.0
        %917 = vmatpush.xpose.msra.mxu0 0.0
        %918 = vmatpush.xpose.msra.mxu0 0.0
        %919 = vmatpush.xpose.msra.mxu0 0.0
        %920 = vmatpush.xpose.msra.mxu0 0.0
        %921 = vmatpush.xpose.msra.mxu0 0.0
        %922 = vmatpush.xpose.msra.mxu0 0.0
        %923 = vmatpush.xpose.msra.mxu0 0.0
        %924 = vmatpush.xpose.msra.mxu0 %v908
        %925 = vmatpush.xpose.msra.mxu0 %v906
        %926 = vmatmul.f32.gmra.mxu0 %v904
        %v927 = vpop.f32.mrf.mxu0
        %v928 = vadd.f32 %v897, %v927
        %929 = vdwg.mxu0
        %v930 = vsel %vm659, %v928, -inf
        %931 = vmax.xlane.f32.xlu0 %v930
        %v932 = vpop.xlane.xlu0 %931
        %v933 = vsub.f32 %v928, %v932
        %v934 = vmul.f32 %v933, 1.442695
        %v935 = vpow.pop %v934
        %v936 = vsel %vm659, %v935, 0.0
        %937 = vadd.xlane.f32.xlu0 %v936
        %v938 = vpop.xlane.xlu0 %937
        %v939 = vrcp.pop %v938
        %v940 = vmul.f32 %v938, %v939
        %v941 = vsub.f32 1.0, %v940
        %v942 = vmul.f32 %v939, %v941
        %v943 = vadd.f32 %v939, %v942
        %vm944 = vweird.f32 %v938
        %vm945 = vweird.f32 %v939
        %vm946 = vmor %vm944, %vm945
        %v947 = vsel %vm946, %v939, %v943
        %v948 = vand.u32 2147483647, %v938
        %vm949 = vcmp.eq.f32.partialorder %v948, 8.507059e+37
        %v950 = vand.u32 %v938, 2147483648
        %v951 = vor.u32 1.1754944e-38, %v950
        %v952 = vsel %vm949, %v951, %v947
        %v953 = vmul.f32 %v935, %v952
        %954 = vrot.lane.b32.xlu0 %v626, 32
        %v955 = vpop.permute.xlu0 %954
        %956 = vrot.lane.b32.xlu0 %v627, 32
        %v957 = vpop.permute.xlu0 %956
        %v961 = vsel %vm659, %v953, 0
        %963 = vmatpush.msra.mxu0 0.0
        %964 = vmatpush.msra.mxu0 0.0
        %965 = vmatpush.msra.mxu0 0.0
        %966 = vmatpush.msra.mxu0 0.0
        %967 = vmatpush.msra.mxu0 0.0
        %968 = vmatpush.msra.mxu0 0.0
        %969 = vmatpush.msra.mxu0 0.0
        %970 = vmatpush.msra.mxu0 0.0
        %971 = vmatpush.msra.mxu0 0.0
        %972 = vmatpush.msra.mxu0 0.0
        %973 = vmatpush.msra.mxu0 0.0
        %974 = vmatpush.msra.mxu0 0.0
        %975 = vmatpush.msra.mxu0 0.0
        %976 = vmatpush.msra.mxu0 0.0
        %977 = vmatpush.msra.mxu0 %v957
        %978 = vmatpush.msra.mxu0 %v955
        %979 = vmatmul.f32.gmra.mxu0 %v961
        %v980 = vpop.f32.mrf.mxu0
        %v981 = vadd.f32 0.0, %v980
        %982 = vdwg.mxu0
        %984 = vrot.lane.b32.xlu0 %v981, 96
        %v985 = vpop.permute.xlu0 %984
        %vm987 = vcmask 1048320
        %988 = vst.msk [vmem:[#allocation4] sm:$0xff] %vm987, %v985
        %v989 = vld [vmem:[#allocation4] sm:$0xff]
        %v990 = vld [vmem:[#allocation14] sm:$0xff]
        %v991 = vld [vmem:[#allocation14 + $0x8] sm:$0xff]
        %v992 = vld [vmem:[#allocation14 + $0x10] sm:$0xff]
        %v993 = vld [vmem:[#allocation14 + $0x18] sm:$0xff]
        %v994 = vld [vmem:[#allocation14 + $0x20] sm:$0xff]
        %v995 = vld [vmem:[#allocation14 + $0x28] sm:$0xff]
        %v996 = vld [vmem:[#allocation14 + $0x30] sm:$0xff]
        %v997 = vld [vmem:[#allocation14 + $0x38] sm:$0xff]
        %v998 = vld [vmem:[#allocation14 + $0x40] sm:$0xff]
        %v999 = vld [vmem:[#allocation14 + $0x48] sm:$0xff]
        %v1000 = vld [vmem:[#allocation14 + $0x50] sm:$0xff]
        %v1001 = vld [vmem:[#allocation14 + $0x58] sm:$0xff]
        %v1002 = vld [vmem:[#allocation14 + $0x60] sm:$0xff]
        %v1003 = vld [vmem:[#allocation14 + $0x68] sm:$0xff]
        %v1004 = vld [vmem:[#allocation14 + $0x70] sm:$0xff]
        %v1005 = vld [vmem:[#allocation14 + $0x78] sm:$0xff]
        %1006 = vmatpush.xpose.msra.mxu0 %v1005
        %1007 = vmatpush.xpose.msra.mxu0 %v1004
        %1008 = vmatpush.xpose.msra.mxu0 %v1003
        %1009 = vmatpush.xpose.msra.mxu0 %v1002
        %1010 = vmatpush.xpose.msra.mxu0 %v1001
        %1011 = vmatpush.xpose.msra.mxu0 %v1000
        %1012 = vmatpush.xpose.msra.mxu0 %v999
        %1013 = vmatpush.xpose.msra.mxu0 %v998
        %1014 = vmatpush.xpose.msra.mxu0 %v997
        %1015 = vmatpush.xpose.msra.mxu0 %v996
        %1016 = vmatpush.xpose.msra.mxu0 %v995
        %1017 = vmatpush.xpose.msra.mxu0 %v994
        %1018 = vmatpush.xpose.msra.mxu0 %v993
        %1019 = vmatpush.xpose.msra.mxu0 %v992
        %1020 = vmatpush.xpose.msra.mxu0 %v991
        %1021 = vmatpush.xpose.msra.mxu0 %v990
        %1022 = vmatmul.f32.gmra.mxu0 %v989
        %v1023 = vpop.f32.mrf.mxu0
        %v1024 = vadd.f32 0.0, %v1023
        %1025 = vdwg.mxu0
        %v1026 = vadd.f32 %v559, %v1024
        %1027 = vst [vmem:[%s470] sm:$0xff] %v1026
        %s1028 = sand.u32 %s237, 1
        %s1029 = scalar_lea.sflag [#allocation7], %s1028
        %s1030 = sand.u32 %s237, 1
        %s1031 = smul.addr %s1030, 8
        %s1032 = scalar_lea.vmem [#allocation17], %s1031
        // Predicated region
        $region85: #{tpu_custom_call.1} parent=51 // pred_check
          %p1033 = pneg %p247
        $region86: #{tpu_custom_call.1} parent=51 // pred_check_branch
          %1035 = sbr.rel (%p1033) target = $region88
        $region87: #{tpu_custom_call.1} parent=51 // pred_region
          %1037 = vsyncadd %s1029, 0
          %s1038 = sadd.s32 %s35, %s34
          %s1039 = smul.addr %s1038, 8
          %s1040 = scalar_lea.hbm %s8, %s1039
          %s1042 = sshll.u32 %s1032, 4
          %s1043 = int_to_ptr.vmem [resolvable:$true] %s1042
          %s1044 = sshll.u32 %s1040, 4
          %s1045 = int_to_ptr.hbm [resolvable:$true] %s1044
          %1047 = dma.vmem_to_hbm [thread:$0]  %s1043, 128, %s1045, %s1029
        $region88: #{tpu_custom_call.1} parent=51 // pred_fallthru
          _
      $region52: #{tpu_custom_call.1} parent=5 // pred_fallthru
        _
      %p1048 = scmp.le.s32.totalorder 2, %s25
      // Predicated region
      $region89: #{tpu_custom_call.1} parent=5 // pred_check
        %p1049 = pneg %p1048
      $region90: #{tpu_custom_call.1} parent=5 // pred_check_branch
        %1051 = sbr.rel (%p1049) target = $region92
      $region91: #{tpu_custom_call.1} parent=5 // pred_region
        %s1052 = ssub.s32 %s25, 2
        // Predicated region
        $region93: #{tpu_custom_call.1} parent=91 // pred_check
          %p1053 = pneg %p253
        $region94: #{tpu_custom_call.1} parent=91 // pred_check_branch
          %1055 = sbr.rel (%p1053) target = $region96
        $region95: #{tpu_custom_call.1} parent=91 // pred_region
          %s1056 = sand.u32 %s238, 1
          %s1057 = scalar_lea.sflag [#allocation7], %s1056
          %s1058 = sand.u32 %s238, 1
          %s1059 = smul.addr %s1058, 8
          %s1060 = scalar_lea.vmem [#allocation17], %s1059
          %1062 = dma.done %s1057, 128
        $region96: #{tpu_custom_call.1} parent=91 // pred_fallthru
          _
      $region92: #{tpu_custom_call.1} parent=5 // pred_fallthru
        _
    $region6: #{tpu_custom_call.1} parent=1 // loop_footer
      %s29 = sadd.s32 1, %s25
    $region7: #{tpu_custom_call.1} parent=1 // loop_footer_branch
      %24 = sbr.rel target = $region3
    $region8: #{tpu_custom_call.1} parent=1 // loop_exit
      _
    %1063 = vsyncpa [#allocation6], 1
    %s1064 = scalar_lea.sflag [#allocation6], 1
    %1065 = vsyncpa %s1064, 1
    %1066 = vsyncpa [#allocation9], 1
    %s1067 = scalar_lea.sflag [#allocation9], 1
    %1068 = vsyncpa %s1067, 1
    %1069 = vsyncpa [#allocation12], 1
    %1070 = vsyncpa [#allocation15], 1
    %1071 = vsyncpa [#allocation7], 1
    %s1072 = scalar_lea.sflag [#allocation7], 1
    %1073 = vsyncpa %s1072, 1

</llo_original>
